<compile_context>
chip_gen: v7x
topology: tpu7x:2x2x1
jax: 0.10.0
libtpu: 0.0.40
codegen_flags: <defaults>
</compile_context>

<pallas_src>
import math
import functools

import jax
import jax.numpy as jnp
from jax import lax
from jax.experimental import pallas as pl
from jax.experimental.pallas import tpu as pltpu


def _mha_kernel(*refs, num_heads, d_k, has_bias, compute_dtype):
    if has_bias:
        (q_ref, k_ref, v_ref, bias_ref,
         wq_ref, bq_ref, wk_ref, bk_ref, wv_ref, bv_ref,
         wo_ref, bo_ref, out_ref, attn_ref) = refs
    else:
        (q_ref, k_ref, v_ref,
         wq_ref, bq_ref, wk_ref, bk_ref, wv_ref, bv_ref,
         wo_ref, bo_ref, out_ref, attn_ref) = refs
        bias_ref = None

    x_q = q_ref[0]                      # (Tq, D) compute_dtype
    x_k = k_ref[0]                      # (S,  D)
    x_v = v_ref[0]                      # (S,  D)

    # Full-width projections in transposed layout: proj[o, t] = sum_i W[o, i] x[t, i].
    # Contraction depth = D (MXU-filling); f32 accumulation; scale folded into wq/bq.
    qp_t = lax.dot_general(wq_ref[...], x_q, (((1,), (1,)), ((), ())),
                           preferred_element_type=jnp.float32) + bq_ref[...]   # (D, Tq)
    kp_t = lax.dot_general(wk_ref[...], x_k, (((1,), (1,)), ((), ())),
                           preferred_element_type=jnp.float32) + bk_ref[...]   # (D, S)
    vp_t = lax.dot_general(wv_ref[...], x_v, (((1,), (1,)), ((), ())),
                           preferred_element_type=jnp.float32) + bv_ref[...]   # (D, S)

    if has_bias:
        bias = bias_ref[0].astype(jnp.float32)     # (Tq, S), hoisted out of head loop

    ctx_parts = []
    for h in range(num_heads):          # static unroll; all heads share the resident tiles
        lo = h * d_k
        # Sublane-aligned f32 slices (d_k is a multiple of 8).
        qh = qp_t[lo:lo + d_k, :].T.astype(compute_dtype)    # (Tq, d_k)
        kh = kp_t[lo:lo + d_k, :].astype(compute_dtype)      # (d_k, S)
        vh = vp_t[lo:lo + d_k, :].astype(compute_dtype)      # (d_k, S)

        # scores = q_h @ k_h^T, scale already folded into the Q projection.
        s = jnp.dot(qh, kh, preferred_element_type=jnp.float32)          # (Tq, S)
        if has_bias:
            s = s + bias

        m = jnp.max(s, axis=-1, keepdims=True)
        e = jnp.exp(s - m)
        p = e * pl.reciprocal(jnp.sum(e, axis=-1, keepdims=True), approx=True)
        # TODO(synk): dropout on attention weights omitted (eval-mode identity).
        attn_ref[0, h] = p.astype(attn_ref.dtype)

        # ctx_h^T = v_h^T @ p^T : (d_k, S) x (Tq, S) contracted over S (NT pattern).
        ctx_parts.append(
            lax.dot_general(vh, p.astype(compute_dtype), (((1,), (1,)), ((), ())),
                            preferred_element_type=jnp.float32))          # (d_k, Tq)

    ctx_t = jnp.concatenate(ctx_parts, axis=0).astype(compute_dtype)      # (D, Tq)

    # Output projection as ONE full-width matmul: out^T = Wo @ ctx^T, then add bias.
    out_t = jnp.dot(wo_ref[...], ctx_t, preferred_element_type=jnp.float32) + bo_ref[...]
    out_ref[0] = out_t.T.astype(out_ref.dtype)                            # (Tq, D)


def prepare_params(params, num_heads, *, compute_dtype=jnp.bfloat16):
    """One-time weight prep: keep nn.Linear weights in (out, in) layout for the
    transposed-domain projections, fold 1/sqrt(d_k) into Wq/bq, cast matmul
    operands to compute_dtype.  Biases are (D, 1) f32 columns."""
    d_model = params["wq_w"].shape[0]
    assert d_model % num_heads == 0
    d_k = d_model // num_heads
    scale = 1.0 / math.sqrt(d_k)

    def w(mat, s=1.0):
        return (jnp.asarray(mat, jnp.float32) * s).astype(compute_dtype)   # (D_out, D_in)

    def col(vec, s=1.0):
        return (jnp.asarray(vec, jnp.float32) * s).reshape(d_model, 1)     # (D, 1) f32

    return {
        "wq": w(params["wq_w"], scale), "bq": col(params["wq_b"], scale),
        "wk": w(params["wk_w"]),        "bk": col(params["wk_b"]),
        "wv": w(params["wv_w"]),        "bv": col(params["wv_b"]),
        "wo": w(params["wo_w"]),        "bo": col(params["wo_b"]),
    }


def _pick_q_tile(seq_len):
    for t in (512, 256, 128):
        if seq_len % t == 0:
            return t
    return seq_len


def _derived_vmem_limit(S, Tq, D, H, attn_bytes, has_bias):
    bf16, f32 = 2, 4
    est = 2 * bf16 * (Tq * D + 2 * S * D)                 # q/k/v blocks, double-buffered
    if has_bias:
        est += 2 * bf16 * Tq * S
    est += 2 * (4 * D * D * bf16 + 4 * D * f32)           # resident weights + biases
    est += 2 * (Tq * D * f32 + H * Tq * S * attn_bytes)   # out + attn output blocks
    est += f32 * ((Tq + 2 * S) * D + 6 * Tq * S + D * Tq)  # live in-kernel intermediates
    est = int(est * 1.5) + (2 << 20)
    return max(32 << 20, min(est, 96 << 20))


def multi_head_attention(q, k, v, prepped, num_heads, mask=None, *,
                         compute_dtype=jnp.bfloat16, attn_dtype=jnp.bfloat16):
    B, S, D = q.shape
    assert D % num_heads == 0
    d_k = D // num_heads
    Tq = _pick_q_tile(S)
    n_q = S // Tq

    qc = q.astype(compute_dtype)
    kc = k.astype(compute_dtype)
    vc = v.astype(compute_dtype)

    has_bias = mask is not None
    if has_bias:
        m = jnp.asarray(mask)
        while m.ndim < 4:
            m = m[None]
        # TODO(synk): only head-shared masks supported (dim 1 broadcastable), as in the module's usage.
        assert m.shape[1] == 1
        mb = m.shape[0]
        m3 = jnp.broadcast_to(m, (mb, 1, S, S)).reshape(mb, S, S)
        # Additive bias, bf16, shared across batch when the mask is (fetched once).
        bias = jnp.where(m3 == 0, jnp.float32(-1e9), jnp.float32(0.0)).astype(jnp.bfloat16)
        if mb == 1:
            bias_spec = pl.BlockSpec((1, Tq, S), lambda b, i: (0, i, 0))
        else:
            bias_spec = pl.BlockSpec((1, Tq, S), lambda b, i: (b, i, 0))

    kernel = functools.partial(_mha_kernel, num_heads=num_heads, d_k=d_k,
                               has_bias=has_bias, compute_dtype=compute_dtype)

    q_spec = pl.BlockSpec((1, Tq, D), lambda b, i: (b, i, 0))
    kv_spec = pl.BlockSpec((1, S, D), lambda b, i: (b, 0, 0))
    w_spec = pl.BlockSpec((D, D), lambda b, i: (0, 0))      # constant index -> DMA'd once
    bvec_spec = pl.BlockSpec((D, 1), lambda b, i: (0, 0))
    out_spec = pl.BlockSpec((1, Tq, D), lambda b, i: (b, i, 0))
    attn_spec = pl.BlockSpec((1, num_heads, Tq, S), lambda b, i: (b, 0, i, 0))

    in_specs = [q_spec, kv_spec, kv_spec]
    inputs = [qc, kc, vc]
    if has_bias:
        in_specs.append(bias_spec)
        inputs.append(bias)
    in_specs += [w_spec, bvec_spec, w_spec, bvec_spec, w_spec, bvec_spec, w_spec, bvec_spec]
    inputs += [prepped["wq"], prepped["bq"], prepped["wk"], prepped["bk"],
               prepped["wv"], prepped["bv"], prepped["wo"], prepped["bo"]]

    vmem_limit = _derived_vmem_limit(S, Tq, D, num_heads,
                                     jnp.dtype(attn_dtype).itemsize, has_bias)

    out, attn = pl.pallas_call(
        kernel,
        out_shape=(
            jax.ShapeDtypeStruct((B, S, D), jnp.float32),
            jax.ShapeDtypeStruct((B, num_heads, S, S), attn_dtype),
        ),
        grid=(B, n_q),
        in_specs=in_specs,
        out_specs=(out_spec, attn_spec),
        compiler_params=pltpu.CompilerParams(
            dimension_semantics=("parallel", "parallel"),
            vmem_limit_bytes=vmem_limit,
        ),
    )(*inputs)
    return out, attn


def _init_linear(key, d_in, d_out):
    # Deterministic init mimicking nn.Linear default: U(-1/sqrt(in), 1/sqrt(in))
    kw, kb = jax.random.split(key)
    bound = 1.0 / math.sqrt(d_in)
    w = jax.random.uniform(kw, (d_out, d_in), jnp.float32, -bound, bound)
    b = jax.random.uniform(kb, (d_out,), jnp.float32, -bound, bound)
    return w, b


def _reference(q, k, v, params, num_heads, mask=None):
    B, S, D = q.shape
    d_k = D // num_heads

    def lin(x, w, b):
        return x @ w.T + b

    qp = lin(q, params["wq_w"], params["wq_b"]).reshape(B, S, num_heads, d_k).transpose(0, 2, 1, 3)
    kp = lin(k, params["wk_w"], params["wk_b"]).reshape(B, S, num_heads, d_k).transpose(0, 2, 1, 3)
    vp = lin(v, params["wv_w"], params["wv_b"]).reshape(B, S, num_heads, d_k).transpose(0, 2, 1, 3)
    scores = jnp.einsum("bhqd,bhkd->bhqk", qp, kp) / math.sqrt(d_k)
    if mask is not None:
        scores = jnp.where(mask == 0, -1e9, scores)
    attn = jax.nn.softmax(scores, axis=-1)
    ctx = jnp.einsum("bhqk,bhkd->bhqd", attn, vp).transpose(0, 2, 1, 3).reshape(B, S, D)
    out = lin(ctx, params["wo_w"], params["wo_b"])
    return out, attn


if __name__ == "__main__":
    B, S, D, H = 2, 8, 32, 4

    key = jax.random.PRNGKey(0)
    kq, kk, kv, k1, k2, k3, k4 = jax.random.split(key, 7)

    q = jax.random.normal(kq, (B, S, D), jnp.float32)
    k = jax.random.normal(kk, (B, S, D), jnp.float32)
    v = jax.random.normal(kv, (B, S, D), jnp.float32)

    params = {}
    params["wq_w"], params["wq_b"] = _init_linear(k1, D, D)
    params["wk_w"], params["wk_b"] = _init_linear(k2, D, D)
    params["wv_w"], params["wv_b"] = _init_linear(k3, D, D)
    params["wo_w"], params["wo_b"] = _init_linear(k4, D, D)

    prepped = prepare_params(params, H)   # hoisted one-time weight prep (scale folded in)

    # No-mask case (bias input compiled out entirely).
    out, attn = multi_head_attention(q, k, v, prepped, H, mask=None)
    jax.block_until_ready((out, attn))
    out_ref, attn_ref = _reference(q, k, v, params, H, mask=None)
    # bf16 MXU inputs + bf16 attn output + approx reciprocal -> loosened tolerances.
    assert jnp.allclose(out, out_ref, atol=3e-2, rtol=5e-2)
    assert jnp.allclose(attn.astype(jnp.float32), attn_ref, atol=2e-2, rtol=2e-2)

    # Causal-mask case (batch/head-shared additive bias, fetched once).
    causal = jnp.tril(jnp.ones((S, S), jnp.float32))[None, None]   # (1, 1, S, S)
    out_m, attn_m = multi_head_attention(q, k, v, prepped, H, mask=causal)
    jax.block_until_ready((out_m, attn_m))
    out_mr, attn_mr = _reference(q, k, v, params, H, mask=causal)
    assert jnp.allclose(out_m, out_mr, atol=3e-2, rtol=5e-2)
    assert jnp.allclose(attn_m.astype(jnp.float32), attn_mr, atol=2e-2, rtol=2e-2)

    print("KERNEL_OK")
</pallas_src>

<mosaic_0001>
module attributes {stable_mosaic.version = 11 : i64} {
  func.func @_mha_kernel(%arg0: i32, %arg1: i32, %arg2: memref<1x8x32xbf16, #tpu.memory_space<vmem>>, %arg3: memref<1x8x32xbf16, #tpu.memory_space<vmem>>, %arg4: memref<1x8x32xbf16, #tpu.memory_space<vmem>>, %arg5: memref<32x32xbf16, #tpu.memory_space<vmem>>, %arg6: memref<32x1xf32, #tpu.memory_space<vmem>>, %arg7: memref<32x32xbf16, #tpu.memory_space<vmem>>, %arg8: memref<32x1xf32, #tpu.memory_space<vmem>>, %arg9: memref<32x32xbf16, #tpu.memory_space<vmem>>, %arg10: memref<32x1xf32, #tpu.memory_space<vmem>>, %arg11: memref<32x32xbf16, #tpu.memory_space<vmem>>, %arg12: memref<32x1xf32, #tpu.memory_space<vmem>>, %arg13: memref<1x8x32xf32, #tpu.memory_space<vmem>>, %arg14: memref<1x4x8x8xbf16, #tpu.memory_space<vmem>>) attributes {dimension_semantics = [#tpu.dimension_semantics<parallel>, #tpu.dimension_semantics<parallel>], iteration_bounds = array<i64: 2, 1>, scalar_prefetch = 0 : i64, scratch_operands = 0 : i64, tpu.core_type = #tpu.core_type<tc>, window_params = [{transform_indices = @transform_0, window_bounds = array<i64: 1, 8, 32>}, {transform_indices = @transform_1, window_bounds = array<i64: 1, 8, 32>}, {transform_indices = @transform_2, window_bounds = array<i64: 1, 8, 32>}, {pipeline_mode = #tpu.pipeline_mode<synchronous>, transform_indices = @transform_3, window_bounds = array<i64: 32, 32>}, {pipeline_mode = #tpu.pipeline_mode<synchronous>, transform_indices = @transform_4, window_bounds = array<i64: 32, 1>}, {pipeline_mode = #tpu.pipeline_mode<synchronous>, transform_indices = @transform_5, window_bounds = array<i64: 32, 32>}, {pipeline_mode = #tpu.pipeline_mode<synchronous>, transform_indices = @transform_6, window_bounds = array<i64: 32, 1>}, {pipeline_mode = #tpu.pipeline_mode<synchronous>, transform_indices = @transform_7, window_bounds = array<i64: 32, 32>}, {pipeline_mode = #tpu.pipeline_mode<synchronous>, transform_indices = @transform_8, window_bounds = array<i64: 32, 1>}, {pipeline_mode = #tpu.pipeline_mode<synchronous>, transform_indices = @transform_9, window_bounds = array<i64: 32, 32>}, {pipeline_mode = #tpu.pipeline_mode<synchronous>, transform_indices = @transform_10, window_bounds = array<i64: 32, 1>}, {transform_indices = @transform_11, window_bounds = array<i64: 1, 8, 32>}, {transform_indices = @transform_12, window_bounds = array<i64: 1, 4, 8, 8>}]} {
    %c0 = arith.constant 0 : index
    %c0_0 = arith.constant 0 : index
    %c0_1 = arith.constant 0 : index
    %0 = vector.load %arg2[%c0, %c0_0, %c0_1] : memref<1x8x32xbf16, #tpu.memory_space<vmem>>, vector<1x8x32xbf16>
    %1 = vector.shape_cast %0 : vector<1x8x32xbf16> to vector<8x32xbf16>
    %c0_2 = arith.constant 0 : index
    %c0_3 = arith.constant 0 : index
    %c0_4 = arith.constant 0 : index
    %2 = vector.load %arg3[%c0_2, %c0_3, %c0_4] : memref<1x8x32xbf16, #tpu.memory_space<vmem>>, vector<1x8x32xbf16>
    %3 = vector.shape_cast %2 : vector<1x8x32xbf16> to vector<8x32xbf16>
    %c0_5 = arith.constant 0 : index
    %c0_6 = arith.constant 0 : index
    %c0_7 = arith.constant 0 : index
    %4 = vector.load %arg4[%c0_5, %c0_6, %c0_7] : memref<1x8x32xbf16, #tpu.memory_space<vmem>>, vector<1x8x32xbf16>
    %5 = vector.shape_cast %4 : vector<1x8x32xbf16> to vector<8x32xbf16>
    %c0_8 = arith.constant 0 : index
    %c0_9 = arith.constant 0 : index
    %6 = vector.load %arg5[%c0_8, %c0_9] : memref<32x32xbf16, #tpu.memory_space<vmem>>, vector<32x32xbf16>
    %cst = arith.constant dense<0.000000e+00> : vector<32x8xf32>
    %7 = tpu.matmul %6, %1, %cst {dimension_numbers = #tpu.dot_dimension_numbers<[1], [1], [0], [0], [0, 0, 1, 0], [], []>} : vector<32x32xbf16>, vector<8x32xbf16>, vector<32x8xf32> -> vector<32x8xf32>
    %c0_10 = arith.constant 0 : index
    %c0_11 = arith.constant 0 : index
    %8 = vector.load %arg6[%c0_10, %c0_11] : memref<32x1xf32, #tpu.memory_space<vmem>>, vector<32x1xf32>
    %9 = vector.broadcast %8 : vector<32x1xf32> to vector<32x8xf32>
    %10 = arith.addf %7, %9 : vector<32x8xf32>
    %c0_12 = arith.constant 0 : index
    %c0_13 = arith.constant 0 : index
    %11 = vector.load %arg7[%c0_12, %c0_13] : memref<32x32xbf16, #tpu.memory_space<vmem>>, vector<32x32xbf16>
    %cst_14 = arith.constant dense<0.000000e+00> : vector<32x8xf32>
    %12 = tpu.matmul %11, %3, %cst_14 {dimension_numbers = #tpu.dot_dimension_numbers<[1], [1], [0], [0], [0, 0, 1, 0], [], []>} : vector<32x32xbf16>, vector<8x32xbf16>, vector<32x8xf32> -> vector<32x8xf32>
    %c0_15 = arith.constant 0 : index
    %c0_16 = arith.constant 0 : index
    %13 = vector.load %arg8[%c0_15, %c0_16] : memref<32x1xf32, #tpu.memory_space<vmem>>, vector<32x1xf32>
    %14 = vector.broadcast %13 : vector<32x1xf32> to vector<32x8xf32>
    %15 = arith.addf %12, %14 : vector<32x8xf32>
    %c0_17 = arith.constant 0 : index
    %c0_18 = arith.constant 0 : index
    %16 = vector.load %arg9[%c0_17, %c0_18] : memref<32x32xbf16, #tpu.memory_space<vmem>>, vector<32x32xbf16>
    %cst_19 = arith.constant dense<0.000000e+00> : vector<32x8xf32>
    %17 = tpu.matmul %16, %5, %cst_19 {dimension_numbers = #tpu.dot_dimension_numbers<[1], [1], [0], [0], [0, 0, 1, 0], [], []>} : vector<32x32xbf16>, vector<8x32xbf16>, vector<32x8xf32> -> vector<32x8xf32>
    %c0_20 = arith.constant 0 : index
    %c0_21 = arith.constant 0 : index
    %18 = vector.load %arg10[%c0_20, %c0_21] : memref<32x1xf32, #tpu.memory_space<vmem>>, vector<32x1xf32>
    %19 = vector.broadcast %18 : vector<32x1xf32> to vector<32x8xf32>
    %20 = arith.addf %17, %19 : vector<32x8xf32>
    %21 = vector.extract_strided_slice %10 {offsets = [0, 0], sizes = [8, 8], strides = [1, 1]} : vector<32x8xf32> to vector<8x8xf32>
    %22 = tpu.transpose %21, [1, 0] : vector<8x8xf32> -> vector<8x8xf32>
    %23 = arith.truncf %22 : vector<8x8xf32> to vector<8x8xbf16>
    %24 = vector.extract_strided_slice %15 {offsets = [0, 0], sizes = [8, 8], strides = [1, 1]} : vector<32x8xf32> to vector<8x8xf32>
    %25 = arith.truncf %24 : vector<8x8xf32> to vector<8x8xbf16>
    %26 = vector.extract_strided_slice %20 {offsets = [0, 0], sizes = [8, 8], strides = [1, 1]} : vector<32x8xf32> to vector<8x8xf32>
    %27 = arith.truncf %26 : vector<8x8xf32> to vector<8x8xbf16>
    %cst_22 = arith.constant dense<0.000000e+00> : vector<8x8xf32>
    %28 = tpu.matmul %23, %25, %cst_22 {dimension_numbers = #tpu.dot_dimension_numbers<[1], [0], [0], [1], [0, 0, 1, 1], [], []>} : vector<8x8xbf16>, vector<8x8xbf16>, vector<8x8xf32> -> vector<8x8xf32>
    %cst_23 = arith.constant dense<0xFF800000> : vector<8xf32>
    %29 = vector.multi_reduction <maximumf>, %28, %cst_23 [1] : vector<8x8xf32> to vector<8xf32>
    %30 = vector.shape_cast %29 : vector<8xf32> to vector<8x1xf32>
    %31 = vector.broadcast %30 : vector<8x1xf32> to vector<8x8xf32>
    %32 = arith.subf %28, %31 : vector<8x8xf32>
    %33 = math.exp %32 : vector<8x8xf32>
    %cst_24 = arith.constant dense<0.000000e+00> : vector<8xf32>
    %34 = vector.multi_reduction <add>, %33, %cst_24 [1] : vector<8x8xf32> to vector<8xf32>
    %35 = vector.shape_cast %34 : vector<8xf32> to vector<8x1xf32>
    %36 = tpu.reciprocal %35 {approx = true} : vector<8x1xf32> -> vector<8x1xf32>
    %37 = vector.broadcast %36 : vector<8x1xf32> to vector<8x8xf32>
    %38 = arith.mulf %33, %37 : vector<8x8xf32>
    %39 = arith.truncf %38 : vector<8x8xf32> to vector<8x8xbf16>
    %c0_25 = arith.constant 0 : index
    %c0_26 = arith.constant 0 : index
    %c0_27 = arith.constant 0 : index
    %c0_28 = arith.constant 0 : index
    %40 = vector.load %arg14[%c0_25, %c0_26, %c0_27, %c0_28] : memref<1x4x8x8xbf16, #tpu.memory_space<vmem>>, vector<1x1x8x8xbf16>
    %41 = vector.shape_cast %40 : vector<1x1x8x8xbf16> to vector<8x8xbf16>
    %42 = vector.shape_cast %39 : vector<8x8xbf16> to vector<1x1x8x8xbf16>
    tpu.vector_store %arg14[%c0_25, %c0_26, %c0_27, %c0_28], %42 {strides = array<i32>} : memref<1x4x8x8xbf16, #tpu.memory_space<vmem>>, vector<1x1x8x8xbf16>,
    %43 = arith.truncf %38 : vector<8x8xf32> to vector<8x8xbf16>
    %cst_29 = arith.constant dense<0.000000e+00> : vector<8x8xf32>
    %44 = tpu.matmul %27, %43, %cst_29 {dimension_numbers = #tpu.dot_dimension_numbers<[1], [1], [0], [0], [0, 0, 1, 0], [], []>} : vector<8x8xbf16>, vector<8x8xbf16>, vector<8x8xf32> -> vector<8x8xf32>
    %45 = vector.extract_strided_slice %10 {offsets = [8, 0], sizes = [8, 8], strides = [1, 1]} : vector<32x8xf32> to vector<8x8xf32>
    %46 = tpu.transpose %45, [1, 0] : vector<8x8xf32> -> vector<8x8xf32>
    %47 = arith.truncf %46 : vector<8x8xf32> to vector<8x8xbf16>
    %48 = vector.extract_strided_slice %15 {offsets = [8, 0], sizes = [8, 8], strides = [1, 1]} : vector<32x8xf32> to vector<8x8xf32>
    %49 = arith.truncf %48 : vector<8x8xf32> to vector<8x8xbf16>
    %50 = vector.extract_strided_slice %20 {offsets = [8, 0], sizes = [8, 8], strides = [1, 1]} : vector<32x8xf32> to vector<8x8xf32>
    %51 = arith.truncf %50 : vector<8x8xf32> to vector<8x8xbf16>
    %cst_30 = arith.constant dense<0.000000e+00> : vector<8x8xf32>
    %52 = tpu.matmul %47, %49, %cst_30 {dimension_numbers = #tpu.dot_dimension_numbers<[1], [0], [0], [1], [0, 0, 1, 1], [], []>} : vector<8x8xbf16>, vector<8x8xbf16>, vector<8x8xf32> -> vector<8x8xf32>
    %cst_31 = arith.constant dense<0xFF800000> : vector<8xf32>
    %53 = vector.multi_reduction <maximumf>, %52, %cst_31 [1] : vector<8x8xf32> to vector<8xf32>
    %54 = vector.shape_cast %53 : vector<8xf32> to vector<8x1xf32>
    %55 = vector.broadcast %54 : vector<8x1xf32> to vector<8x8xf32>
    %56 = arith.subf %52, %55 : vector<8x8xf32>
    %57 = math.exp %56 : vector<8x8xf32>
    %cst_32 = arith.constant dense<0.000000e+00> : vector<8xf32>
    %58 = vector.multi_reduction <add>, %57, %cst_32 [1] : vector<8x8xf32> to vector<8xf32>
    %59 = vector.shape_cast %58 : vector<8xf32> to vector<8x1xf32>
    %60 = tpu.reciprocal %59 {approx = true} : vector<8x1xf32> -> vector<8x1xf32>
    %61 = vector.broadcast %60 : vector<8x1xf32> to vector<8x8xf32>
    %62 = arith.mulf %57, %61 : vector<8x8xf32>
    %63 = arith.truncf %62 : vector<8x8xf32> to vector<8x8xbf16>
    %c0_33 = arith.constant 0 : index
    %c1 = arith.constant 1 : index
    %c0_34 = arith.constant 0 : index
    %c0_35 = arith.constant 0 : index
    %64 = vector.load %arg14[%c0_33, %c1, %c0_34, %c0_35] : memref<1x4x8x8xbf16, #tpu.memory_space<vmem>>, vector<1x1x8x8xbf16>
    %65 = vector.shape_cast %64 : vector<1x1x8x8xbf16> to vector<8x8xbf16>
    %66 = vector.shape_cast %63 : vector<8x8xbf16> to vector<1x1x8x8xbf16>
    tpu.vector_store %arg14[%c0_33, %c1, %c0_34, %c0_35], %66 {strides = array<i32>} : memref<1x4x8x8xbf16, #tpu.memory_space<vmem>>, vector<1x1x8x8xbf16>,
    %67 = arith.truncf %62 : vector<8x8xf32> to vector<8x8xbf16>
    %cst_36 = arith.constant dense<0.000000e+00> : vector<8x8xf32>
    %68 = tpu.matmul %51, %67, %cst_36 {dimension_numbers = #tpu.dot_dimension_numbers<[1], [1], [0], [0], [0, 0, 1, 0], [], []>} : vector<8x8xbf16>, vector<8x8xbf16>, vector<8x8xf32> -> vector<8x8xf32>
    %69 = vector.extract_strided_slice %10 {offsets = [16, 0], sizes = [8, 8], strides = [1, 1]} : vector<32x8xf32> to vector<8x8xf32>
    %70 = tpu.transpose %69, [1, 0] : vector<8x8xf32> -> vector<8x8xf32>
    %71 = arith.truncf %70 : vector<8x8xf32> to vector<8x8xbf16>
    %72 = vector.extract_strided_slice %15 {offsets = [16, 0], sizes = [8, 8], strides = [1, 1]} : vector<32x8xf32> to vector<8x8xf32>
    %73 = arith.truncf %72 : vector<8x8xf32> to vector<8x8xbf16>
    %74 = vector.extract_strided_slice %20 {offsets = [16, 0], sizes = [8, 8], strides = [1, 1]} : vector<32x8xf32> to vector<8x8xf32>
    %75 = arith.truncf %74 : vector<8x8xf32> to vector<8x8xbf16>
    %cst_37 = arith.constant dense<0.000000e+00> : vector<8x8xf32>
    %76 = tpu.matmul %71, %73, %cst_37 {dimension_numbers = #tpu.dot_dimension_numbers<[1], [0], [0], [1], [0, 0, 1, 1], [], []>} : vector<8x8xbf16>, vector<8x8xbf16>, vector<8x8xf32> -> vector<8x8xf32>
    %cst_38 = arith.constant dense<0xFF800000> : vector<8xf32>
    %77 = vector.multi_reduction <maximumf>, %76, %cst_38 [1] : vector<8x8xf32> to vector<8xf32>
    %78 = vector.shape_cast %77 : vector<8xf32> to vector<8x1xf32>
    %79 = vector.broadcast %78 : vector<8x1xf32> to vector<8x8xf32>
    %80 = arith.subf %76, %79 : vector<8x8xf32>
    %81 = math.exp %80 : vector<8x8xf32>
    %cst_39 = arith.constant dense<0.000000e+00> : vector<8xf32>
    %82 = vector.multi_reduction <add>, %81, %cst_39 [1] : vector<8x8xf32> to vector<8xf32>
    %83 = vector.shape_cast %82 : vector<8xf32> to vector<8x1xf32>
    %84 = tpu.reciprocal %83 {approx = true} : vector<8x1xf32> -> vector<8x1xf32>
    %85 = vector.broadcast %84 : vector<8x1xf32> to vector<8x8xf32>
    %86 = arith.mulf %81, %85 : vector<8x8xf32>
    %87 = arith.truncf %86 : vector<8x8xf32> to vector<8x8xbf16>
    %c0_40 = arith.constant 0 : index
    %c2 = arith.constant 2 : index
    %c0_41 = arith.constant 0 : index
    %c0_42 = arith.constant 0 : index
    %88 = vector.load %arg14[%c0_40, %c2, %c0_41, %c0_42] : memref<1x4x8x8xbf16, #tpu.memory_space<vmem>>, vector<1x1x8x8xbf16>
    %89 = vector.shape_cast %88 : vector<1x1x8x8xbf16> to vector<8x8xbf16>
    %90 = vector.shape_cast %87 : vector<8x8xbf16> to vector<1x1x8x8xbf16>
    tpu.vector_store %arg14[%c0_40, %c2, %c0_41, %c0_42], %90 {strides = array<i32>} : memref<1x4x8x8xbf16, #tpu.memory_space<vmem>>, vector<1x1x8x8xbf16>,
    %91 = arith.truncf %86 : vector<8x8xf32> to vector<8x8xbf16>
    %cst_43 = arith.constant dense<0.000000e+00> : vector<8x8xf32>
    %92 = tpu.matmul %75, %91, %cst_43 {dimension_numbers = #tpu.dot_dimension_numbers<[1], [1], [0], [0], [0, 0, 1, 0], [], []>} : vector<8x8xbf16>, vector<8x8xbf16>, vector<8x8xf32> -> vector<8x8xf32>
    %93 = vector.extract_strided_slice %10 {offsets = [24, 0], sizes = [8, 8], strides = [1, 1]} : vector<32x8xf32> to vector<8x8xf32>
    %94 = tpu.transpose %93, [1, 0] : vector<8x8xf32> -> vector<8x8xf32>
    %95 = arith.truncf %94 : vector<8x8xf32> to vector<8x8xbf16>
    %96 = vector.extract_strided_slice %15 {offsets = [24, 0], sizes = [8, 8], strides = [1, 1]} : vector<32x8xf32> to vector<8x8xf32>
    %97 = arith.truncf %96 : vector<8x8xf32> to vector<8x8xbf16>
    %98 = vector.extract_strided_slice %20 {offsets = [24, 0], sizes = [8, 8], strides = [1, 1]} : vector<32x8xf32> to vector<8x8xf32>
    %99 = arith.truncf %98 : vector<8x8xf32> to vector<8x8xbf16>
    %cst_44 = arith.constant dense<0.000000e+00> : vector<8x8xf32>
    %100 = tpu.matmul %95, %97, %cst_44 {dimension_numbers = #tpu.dot_dimension_numbers<[1], [0], [0], [1], [0, 0, 1, 1], [], []>} : vector<8x8xbf16>, vector<8x8xbf16>, vector<8x8xf32> -> vector<8x8xf32>
    %cst_45 = arith.constant dense<0xFF800000> : vector<8xf32>
    %101 = vector.multi_reduction <maximumf>, %100, %cst_45 [1] : vector<8x8xf32> to vector<8xf32>
    %102 = vector.shape_cast %101 : vector<8xf32> to vector<8x1xf32>
    %103 = vector.broadcast %102 : vector<8x1xf32> to vector<8x8xf32>
    %104 = arith.subf %100, %103 : vector<8x8xf32>
    %105 = math.exp %104 : vector<8x8xf32>
    %cst_46 = arith.constant dense<0.000000e+00> : vector<8xf32>
    %106 = vector.multi_reduction <add>, %105, %cst_46 [1] : vector<8x8xf32> to vector<8xf32>
    %107 = vector.shape_cast %106 : vector<8xf32> to vector<8x1xf32>
    %108 = tpu.reciprocal %107 {approx = true} : vector<8x1xf32> -> vector<8x1xf32>
    %109 = vector.broadcast %108 : vector<8x1xf32> to vector<8x8xf32>
    %110 = arith.mulf %105, %109 : vector<8x8xf32>
    %111 = arith.truncf %110 : vector<8x8xf32> to vector<8x8xbf16>
    %c0_47 = arith.constant 0 : index
    %c3 = arith.constant 3 : index
    %c0_48 = arith.constant 0 : index
    %c0_49 = arith.constant 0 : index
    %112 = vector.load %arg14[%c0_47, %c3, %c0_48, %c0_49] : memref<1x4x8x8xbf16, #tpu.memory_space<vmem>>, vector<1x1x8x8xbf16>
    %113 = vector.shape_cast %112 : vector<1x1x8x8xbf16> to vector<8x8xbf16>
    %114 = vector.shape_cast %111 : vector<8x8xbf16> to vector<1x1x8x8xbf16>
    tpu.vector_store %arg14[%c0_47, %c3, %c0_48, %c0_49], %114 {strides = array<i32>} : memref<1x4x8x8xbf16, #tpu.memory_space<vmem>>, vector<1x1x8x8xbf16>,
    %115 = arith.truncf %110 : vector<8x8xf32> to vector<8x8xbf16>
    %cst_50 = arith.constant dense<0.000000e+00> : vector<8x8xf32>
    %116 = tpu.matmul %99, %115, %cst_50 {dimension_numbers = #tpu.dot_dimension_numbers<[1], [1], [0], [0], [0, 0, 1, 0], [], []>} : vector<8x8xbf16>, vector<8x8xbf16>, vector<8x8xf32> -> vector<8x8xf32>
    %117 = tpu.concatenate %44, %68, %92, %116 in 0 : vector<8x8xf32>, vector<8x8xf32>, vector<8x8xf32>, vector<8x8xf32> -> vector<32x8xf32>
    %118 = arith.truncf %117 : vector<32x8xf32> to vector<32x8xbf16>
    %c0_51 = arith.constant 0 : index
    %c0_52 = arith.constant 0 : index
    %119 = vector.load %arg11[%c0_51, %c0_52] : memref<32x32xbf16, #tpu.memory_space<vmem>>, vector<32x32xbf16>
    %cst_53 = arith.constant dense<0.000000e+00> : vector<32x8xf32>
    %120 = tpu.matmul %119, %118, %cst_53 {dimension_numbers = #tpu.dot_dimension_numbers<[1], [0], [0], [1], [0, 0, 1, 1], [], []>} : vector<32x32xbf16>, vector<32x8xbf16>, vector<32x8xf32> -> vector<32x8xf32>
    %c0_54 = arith.constant 0 : index
    %c0_55 = arith.constant 0 : index
    %121 = vector.load %arg12[%c0_54, %c0_55] : memref<32x1xf32, #tpu.memory_space<vmem>>, vector<32x1xf32>
    %122 = vector.broadcast %121 : vector<32x1xf32> to vector<32x8xf32>
    %123 = arith.addf %120, %122 : vector<32x8xf32>
    %124 = tpu.transpose %123, [1, 0] : vector<32x8xf32> -> vector<8x32xf32>
    %c0_56 = arith.constant 0 : index
    %c0_57 = arith.constant 0 : index
    %c0_58 = arith.constant 0 : index
    %125 = vector.load %arg13[%c0_56, %c0_57, %c0_58] : memref<1x8x32xf32, #tpu.memory_space<vmem>>, vector<1x8x32xf32>
    %126 = vector.shape_cast %125 : vector<1x8x32xf32> to vector<8x32xf32>
    %127 = vector.shape_cast %124 : vector<8x32xf32> to vector<1x8x32xf32>
    tpu.vector_store %arg13[%c0_56, %c0_57, %c0_58], %127 {strides = array<i32>} : memref<1x8x32xf32, #tpu.memory_space<vmem>>, vector<1x8x32xf32>,
    return
  }
  func.func @transform_0(%arg0: i32, %arg1: i32) -> (i32, i32, i32) {
    %c0_i32 = arith.constant 0 : i32
    %c0_i32_0 = arith.constant 0 : i32
    return %arg0, %arg1, %c0_i32 : i32, i32, i32
  }
  func.func @transform_1(%arg0: i32, %arg1: i32) -> (i32, i32, i32) {
    %c0_i32 = arith.constant 0 : i32
    %c0_i32_0 = arith.constant 0 : i32
    %c0_i32_1 = arith.constant 0 : i32
    return %arg0, %c0_i32, %c0_i32_0 : i32, i32, i32
  }
  func.func @transform_2(%arg0: i32, %arg1: i32) -> (i32, i32, i32) {
    %c0_i32 = arith.constant 0 : i32
    %c0_i32_0 = arith.constant 0 : i32
    %c0_i32_1 = arith.constant 0 : i32
    return %arg0, %c0_i32, %c0_i32_0 : i32, i32, i32
  }
  func.func @transform_3(%arg0: i32, %arg1: i32) -> (i32, i32) {
    %c0_i32 = arith.constant 0 : i32
    %c0_i32_0 = arith.constant 0 : i32
    %c0_i32_1 = arith.constant 0 : i32
    return %c0_i32, %c0_i32_0 : i32, i32
  }
  func.func @transform_4(%arg0: i32, %arg1: i32) -> (i32, i32) {
    %c0_i32 = arith.constant 0 : i32
    %c0_i32_0 = arith.constant 0 : i32
    %c0_i32_1 = arith.constant 0 : i32
    return %c0_i32, %c0_i32_0 : i32, i32
  }
  func.func @transform_5(%arg0: i32, %arg1: i32) -> (i32, i32) {
    %c0_i32 = arith.constant 0 : i32
    %c0_i32_0 = arith.constant 0 : i32
    %c0_i32_1 = arith.constant 0 : i32
    return %c0_i32, %c0_i32_0 : i32, i32
  }
  func.func @transform_6(%arg0: i32, %arg1: i32) -> (i32, i32) {
    %c0_i32 = arith.constant 0 : i32
    %c0_i32_0 = arith.constant 0 : i32
    %c0_i32_1 = arith.constant 0 : i32
    return %c0_i32, %c0_i32_0 : i32, i32
  }
  func.func @transform_7(%arg0: i32, %arg1: i32) -> (i32, i32) {
    %c0_i32 = arith.constant 0 : i32
    %c0_i32_0 = arith.constant 0 : i32
    %c0_i32_1 = arith.constant 0 : i32
    return %c0_i32, %c0_i32_0 : i32, i32
  }
  func.func @transform_8(%arg0: i32, %arg1: i32) -> (i32, i32) {
    %c0_i32 = arith.constant 0 : i32
    %c0_i32_0 = arith.constant 0 : i32
    %c0_i32_1 = arith.constant 0 : i32
    return %c0_i32, %c0_i32_0 : i32, i32
  }
  func.func @transform_9(%arg0: i32, %arg1: i32) -> (i32, i32) {
    %c0_i32 = arith.constant 0 : i32
    %c0_i32_0 = arith.constant 0 : i32
    %c0_i32_1 = arith.constant 0 : i32
    return %c0_i32, %c0_i32_0 : i32, i32
  }
  func.func @transform_10(%arg0: i32, %arg1: i32) -> (i32, i32) {
    %c0_i32 = arith.constant 0 : i32
    %c0_i32_0 = arith.constant 0 : i32
    %c0_i32_1 = arith.constant 0 : i32
    return %c0_i32, %c0_i32_0 : i32, i32
  }
  func.func @transform_11(%arg0: i32, %arg1: i32) -> (i32, i32, i32) {
    %c0_i32 = arith.constant 0 : i32
    %c0_i32_0 = arith.constant 0 : i32
    return %arg0, %arg1, %c0_i32 : i32, i32, i32
  }
  func.func @transform_12(%arg0: i32, %arg1: i32) -> (i32, i32, i32, i32) {
    %c0_i32 = arith.constant 0 : i32
    %c0_i32_0 = arith.constant 0 : i32
    %c0_i32_1 = arith.constant 0 : i32
    return %arg0, %c0_i32, %arg1, %c0_i32_0 : i32, i32, i32, i32
  }
}

</mosaic_0001>

<llo_original>
// kernel: tpu_custom_call.1
$region0: #{tpu_custom_call.1}
  #allocation0 [shape = 'u32[]', space=smem, size = 0x4, offset = 0x4, fixed_abs, tag = 'smem constant byte address 0x4 - core index']
  #allocation1 [shape = 'u32[144,128]{1,0:T(1,128)}', space=vmem, size = 0x12000, scoped, tag = 'internal scratch']
  %s0 = inlined_call_operand.vmem [shape: bf16[2,8,32], index: 0, kind: input, shape index: {}]
  %s1 = inlined_call_operand.vmem [shape: bf16[2,8,32], index: 1, kind: input, shape index: {}]
  %s2 = inlined_call_operand.vmem [shape: bf16[2,8,32], index: 2, kind: input, shape index: {}]
  %s3 = inlined_call_operand.vmem [shape: bf16[32,32], index: 3, kind: input, shape index: {}]
  %s4 = inlined_call_operand.vmem [shape: f32[32,1], index: 4, kind: input, shape index: {}]
  %s5 = inlined_call_operand.vmem [shape: bf16[32,32], index: 5, kind: input, shape index: {}]
  %s6 = inlined_call_operand.vmem [shape: f32[32,1], index: 6, kind: input, shape index: {}]
  %s7 = inlined_call_operand.vmem [shape: bf16[32,32], index: 7, kind: input, shape index: {}]
  %s8 = inlined_call_operand.vmem [shape: f32[32,1], index: 8, kind: input, shape index: {}]
  %s9 = inlined_call_operand.vmem [shape: bf16[32,32], index: 9, kind: input, shape index: {}]
  %s10 = inlined_call_operand.vmem [shape: f32[32,1], index: 10, kind: input, shape index: {}]
  %s11 = inlined_call_operand.hbm [shape: f32[2,8,32], index: 11, kind: output, shape index: {0}]
  %s12 = inlined_call_operand.hbm [shape: bf16[2,4,8,8], index: 12, kind: output, shape index: {1}]
  %13 = xla_tuple %s11, %s12
  %s14 = sld [smem:[#allocation0]]
  $region85: #{tpu_custom_call.1} parent=0
    _
  %s16 = ssub.s32 1, %s14
  %s17 = scalar_select 0, %s16, %s14
  $region1: #{tpu_custom_call.1} parent=0
    #allocation2 [shape = 'u8[8192]{0}', space=vmem, size = 0x2000, scoped, tag = 'output window, operand 0']
    #allocation3 [shape = 's32[2]{0}', space=sflag, size = 0x8, scoped, tag = 'scoped memory for tpu_custom_call.1']
    #allocation4 [shape = 'u8[16384]{0}', space=vmem, size = 0x4000, scoped, tag = 'output window, operand 1']
    #allocation5 [shape = 's32[2]{0}', space=sflag, size = 0x8, scoped, tag = 'scoped memory for tpu_custom_call.1']
    %18 = vsyncpa [#allocation3], 0
    %s19 = scalar_lea.sflag [#allocation3], 1
    %20 = vsyncpa %s19, 0
    %21 = vsyncpa [#allocation5], 0
    %s22 = scalar_lea.sflag [#allocation5], 1
    %23 = vsyncpa %s22, 0
    loop: start=0, step=1, limit=4
    $region2: #{tpu_custom_call.1} parent=1 // loop_pre_header
      _
    $region3: #{tpu_custom_call.1} parent=1 // loop_header
      %s25 = sphi 0, %s29
      %p26 = scmp.ge.s32.totalorder %s25, 4
      %s32 = sphi 0, %s44
      %s33 = sphi 0, %s40
      %s34 = sphi 0, %s32
      %s35 = sphi 0, %s33
      %s36 = sphi 0, %s34
      %s37 = sphi 0, %s35
      %s49 = sphi 0, %s51
      %s52 = sphi 0, %s49
      %s53 = sphi 0, %s52
      %s69 = sphi 0, %s53
      %s75 = sphi 0, %s77
      %s78 = sphi 0, %s75
      %s79 = sphi 0, %s78
      %s95 = sphi 0, %s79
      %s101 = sphi 0, %s103
      %s104 = sphi 0, %s101
      %s105 = sphi 0, %s104
      %s121 = sphi 0, %s105
      %s125 = sphi 0, %s125
      %s127 = sphi 0, %s125
      %s128 = sphi 0, %s127
      %s142 = sphi 0, %s128
      %s146 = sphi 0, %s146
      %s148 = sphi 0, %s146
      %s149 = sphi 0, %s148
      %s163 = sphi 0, %s149
      %s167 = sphi 0, %s167
      %s169 = sphi 0, %s167
      %s170 = sphi 0, %s169
      %s184 = sphi 0, %s170
      %s188 = sphi 0, %s188
      %s190 = sphi 0, %s188
      %s191 = sphi 0, %s190
      %s205 = sphi 0, %s191
      %s209 = sphi 0, %s209
      %s211 = sphi 0, %s209
      %s212 = sphi 0, %s211
      %s226 = sphi 0, %s212
      %s230 = sphi 0, %s230
      %s232 = sphi 0, %s230
      %s233 = sphi 0, %s232
      %s247 = sphi 0, %s233
      %s251 = sphi 0, %s251
      %s253 = sphi 0, %s251
      %s254 = sphi 0, %s253
      %s268 = sphi 0, %s254
      %s272 = sphi 0, %s272
      %s274 = sphi 0, %s272
      %s275 = sphi 0, %s274
      %s289 = sphi 0, %s275
      %s297 = sphi 0, %s299
      %s300 = sphi 0, %s297
      %s301 = sphi 0, %s300
      %s317 = sphi 0, %s301
      %s325 = sphi 0, %s327
      %s328 = sphi 0, %s325
      %s329 = sphi 0, %s328
      %s345 = sphi 0, %s329
    $region4: #{tpu_custom_call.1} parent=1 // loop_header_branch
      %28 = sbr.rel (%p26) target = $region8
    $region5: #{tpu_custom_call.1} parent=1 // loop_body
      %s30 = ssub.s32 %s25, 1
      %s31 = ssub.s32 %s25, 2
      %s38 = sadd.s32 1, %s33
      %p39 = scmp.ge.s32.totalorder %s38, 1
      %s40 = scalar_select %p39, 0, %s38
      %s41 = sadd.s32 1, %s32
      %s42 = scalar_select %p39, %s41, %s32
      %p43 = scmp.ge.s32.totalorder %s42, 2
      %s44 = scalar_select %p43, 0, %s42
      %s45 = ssub.s32 %s32, %s44
      %s46 = ssub.s32 %s33, %s40
      %s47 = sor.u32 %s45, %s46
      %p48 = scmp.eq.s32.totalorder %s47, 0
      %s50 = sadd.s32 %s49, 1
      %s51 = scalar_select %p48, %s49, %s50
      %p54 = pneg %p48
      %p55 = scmp.eq.s32.totalorder %s25, 1
      %p56 = por %p54, %p55
      %p57 = scmp.ne.s32.totalorder %s49, %s52
      %p58 = scmp.eq.s32.totalorder %s25, 0
      %p59 = por %p57, %p58
      %p60 = scmp.ne.s32.totalorder %s49, %s52
      %p61 = scmp.eq.s32.totalorder %s30, 1
      %p62 = por %p60, %p61
      %p63 = scmp.ne.s32.totalorder %s52, %s53
      %p64 = scmp.eq.s32.totalorder %s30, 0
      %p65 = por %p63, %p64
      %p66 = scmp.ne.s32.totalorder %s52, %s53
      %p67 = scmp.eq.s32.totalorder %s31, 1
      %p68 = por %p66, %p67
      %p70 = scmp.ne.s32.totalorder %s53, %s69
      %p71 = scmp.eq.s32.totalorder %s31, 0
      %p72 = por %p70, %p71
      %s73 = ssub.s32 %s32, %s44
      %p74 = scmp.eq.s32.totalorder %s73, 0
      %s76 = sadd.s32 %s75, 1
      %s77 = scalar_select %p74, %s75, %s76
      %p80 = pneg %p74
      %p81 = scmp.eq.s32.totalorder %s25, 1
      %p82 = por %p80, %p81
      %p83 = scmp.ne.s32.totalorder %s75, %s78
      %p84 = scmp.eq.s32.totalorder %s25, 0
      %p85 = por %p83, %p84
      %p86 = scmp.ne.s32.totalorder %s75, %s78
      %p87 = scmp.eq.s32.totalorder %s30, 1
      %p88 = por %p86, %p87
      %p89 = scmp.ne.s32.totalorder %s78, %s79
      %p90 = scmp.eq.s32.totalorder %s30, 0
      %p91 = por %p89, %p90
      %p92 = scmp.ne.s32.totalorder %s78, %s79
      %p93 = scmp.eq.s32.totalorder %s31, 1
      %p94 = por %p92, %p93
      %p96 = scmp.ne.s32.totalorder %s79, %s95
      %p97 = scmp.eq.s32.totalorder %s31, 0
      %p98 = por %p96, %p97
      %s99 = ssub.s32 %s32, %s44
      %p100 = scmp.eq.s32.totalorder %s99, 0
      %s102 = sadd.s32 %s101, 1
      %s103 = scalar_select %p100, %s101, %s102
      %p106 = pneg %p100
      %p107 = scmp.eq.s32.totalorder %s25, 1
      %p108 = por %p106, %p107
      %p109 = scmp.ne.s32.totalorder %s101, %s104
      %p110 = scmp.eq.s32.totalorder %s25, 0
      %p111 = por %p109, %p110
      %p112 = scmp.ne.s32.totalorder %s101, %s104
      %p113 = scmp.eq.s32.totalorder %s30, 1
      %p114 = por %p112, %p113
      %p115 = scmp.ne.s32.totalorder %s104, %s105
      %p116 = scmp.eq.s32.totalorder %s30, 0
      %p117 = por %p115, %p116
      %p118 = scmp.ne.s32.totalorder %s104, %s105
      %p119 = scmp.eq.s32.totalorder %s31, 1
      %p120 = por %p118, %p119
      %p122 = scmp.ne.s32.totalorder %s105, %s121
      %p123 = scmp.eq.s32.totalorder %s31, 0
      %p124 = por %p122, %p123
      %s126 = sadd.s32 %s125, 1
      %p129 = scmp.eq.s32.totalorder %s25, 1
      %p130 = scmp.ne.s32.totalorder %s125, %s127
      %p131 = scmp.eq.s32.totalorder %s25, 0
      %p132 = por %p130, %p131
      %p133 = scmp.ne.s32.totalorder %s125, %s127
      %p134 = scmp.eq.s32.totalorder %s30, 1
      %p135 = por %p133, %p134
      %p136 = scmp.ne.s32.totalorder %s127, %s128
      %p137 = scmp.eq.s32.totalorder %s30, 0
      %p138 = por %p136, %p137
      %p139 = scmp.ne.s32.totalorder %s127, %s128
      %p140 = scmp.eq.s32.totalorder %s31, 1
      %p141 = por %p139, %p140
      %p143 = scmp.ne.s32.totalorder %s128, %s142
      %p144 = scmp.eq.s32.totalorder %s31, 0
      %p145 = por %p143, %p144
      %s147 = sadd.s32 %s146, 1
      %p150 = scmp.eq.s32.totalorder %s25, 1
      %p151 = scmp.ne.s32.totalorder %s146, %s148
      %p152 = scmp.eq.s32.totalorder %s25, 0
      %p153 = por %p151, %p152
      %p154 = scmp.ne.s32.totalorder %s146, %s148
      %p155 = scmp.eq.s32.totalorder %s30, 1
      %p156 = por %p154, %p155
      %p157 = scmp.ne.s32.totalorder %s148, %s149
      %p158 = scmp.eq.s32.totalorder %s30, 0
      %p159 = por %p157, %p158
      %p160 = scmp.ne.s32.totalorder %s148, %s149
      %p161 = scmp.eq.s32.totalorder %s31, 1
      %p162 = por %p160, %p161
      %p164 = scmp.ne.s32.totalorder %s149, %s163
      %p165 = scmp.eq.s32.totalorder %s31, 0
      %p166 = por %p164, %p165
      %s168 = sadd.s32 %s167, 1
      %p171 = scmp.eq.s32.totalorder %s25, 1
      %p172 = scmp.ne.s32.totalorder %s167, %s169
      %p173 = scmp.eq.s32.totalorder %s25, 0
      %p174 = por %p172, %p173
      %p175 = scmp.ne.s32.totalorder %s167, %s169
      %p176 = scmp.eq.s32.totalorder %s30, 1
      %p177 = por %p175, %p176
      %p178 = scmp.ne.s32.totalorder %s169, %s170
      %p179 = scmp.eq.s32.totalorder %s30, 0
      %p180 = por %p178, %p179
      %p181 = scmp.ne.s32.totalorder %s169, %s170
      %p182 = scmp.eq.s32.totalorder %s31, 1
      %p183 = por %p181, %p182
      %p185 = scmp.ne.s32.totalorder %s170, %s184
      %p186 = scmp.eq.s32.totalorder %s31, 0
      %p187 = por %p185, %p186
      %s189 = sadd.s32 %s188, 1
      %p192 = scmp.eq.s32.totalorder %s25, 1
      %p193 = scmp.ne.s32.totalorder %s188, %s190
      %p194 = scmp.eq.s32.totalorder %s25, 0
      %p195 = por %p193, %p194
      %p196 = scmp.ne.s32.totalorder %s188, %s190
      %p197 = scmp.eq.s32.totalorder %s30, 1
      %p198 = por %p196, %p197
      %p199 = scmp.ne.s32.totalorder %s190, %s191
      %p200 = scmp.eq.s32.totalorder %s30, 0
      %p201 = por %p199, %p200
      %p202 = scmp.ne.s32.totalorder %s190, %s191
      %p203 = scmp.eq.s32.totalorder %s31, 1
      %p204 = por %p202, %p203
      %p206 = scmp.ne.s32.totalorder %s191, %s205
      %p207 = scmp.eq.s32.totalorder %s31, 0
      %p208 = por %p206, %p207
      %s210 = sadd.s32 %s209, 1
      %p213 = scmp.eq.s32.totalorder %s25, 1
      %p214 = scmp.ne.s32.totalorder %s209, %s211
      %p215 = scmp.eq.s32.totalorder %s25, 0
      %p216 = por %p214, %p215
      %p217 = scmp.ne.s32.totalorder %s209, %s211
      %p218 = scmp.eq.s32.totalorder %s30, 1
      %p219 = por %p217, %p218
      %p220 = scmp.ne.s32.totalorder %s211, %s212
      %p221 = scmp.eq.s32.totalorder %s30, 0
      %p222 = por %p220, %p221
      %p223 = scmp.ne.s32.totalorder %s211, %s212
      %p224 = scmp.eq.s32.totalorder %s31, 1
      %p225 = por %p223, %p224
      %p227 = scmp.ne.s32.totalorder %s212, %s226
      %p228 = scmp.eq.s32.totalorder %s31, 0
      %p229 = por %p227, %p228
      %s231 = sadd.s32 %s230, 1
      %p234 = scmp.eq.s32.totalorder %s25, 1
      %p235 = scmp.ne.s32.totalorder %s230, %s232
      %p236 = scmp.eq.s32.totalorder %s25, 0
      %p237 = por %p235, %p236
      %p238 = scmp.ne.s32.totalorder %s230, %s232
      %p239 = scmp.eq.s32.totalorder %s30, 1
      %p240 = por %p238, %p239
      %p241 = scmp.ne.s32.totalorder %s232, %s233
      %p242 = scmp.eq.s32.totalorder %s30, 0
      %p243 = por %p241, %p242
      %p244 = scmp.ne.s32.totalorder %s232, %s233
      %p245 = scmp.eq.s32.totalorder %s31, 1
      %p246 = por %p244, %p245
      %p248 = scmp.ne.s32.totalorder %s233, %s247
      %p249 = scmp.eq.s32.totalorder %s31, 0
      %p250 = por %p248, %p249
      %s252 = sadd.s32 %s251, 1
      %p255 = scmp.eq.s32.totalorder %s25, 1
      %p256 = scmp.ne.s32.totalorder %s251, %s253
      %p257 = scmp.eq.s32.totalorder %s25, 0
      %p258 = por %p256, %p257
      %p259 = scmp.ne.s32.totalorder %s251, %s253
      %p260 = scmp.eq.s32.totalorder %s30, 1
      %p261 = por %p259, %p260
      %p262 = scmp.ne.s32.totalorder %s253, %s254
      %p263 = scmp.eq.s32.totalorder %s30, 0
      %p264 = por %p262, %p263
      %p265 = scmp.ne.s32.totalorder %s253, %s254
      %p266 = scmp.eq.s32.totalorder %s31, 1
      %p267 = por %p265, %p266
      %p269 = scmp.ne.s32.totalorder %s254, %s268
      %p270 = scmp.eq.s32.totalorder %s31, 0
      %p271 = por %p269, %p270
      %s273 = sadd.s32 %s272, 1
      %p276 = scmp.eq.s32.totalorder %s25, 1
      %p277 = scmp.ne.s32.totalorder %s272, %s274
      %p278 = scmp.eq.s32.totalorder %s25, 0
      %p279 = por %p277, %p278
      %p280 = scmp.ne.s32.totalorder %s272, %s274
      %p281 = scmp.eq.s32.totalorder %s30, 1
      %p282 = por %p280, %p281
      %p283 = scmp.ne.s32.totalorder %s274, %s275
      %p284 = scmp.eq.s32.totalorder %s30, 0
      %p285 = por %p283, %p284
      %p286 = scmp.ne.s32.totalorder %s274, %s275
      %p287 = scmp.eq.s32.totalorder %s31, 1
      %p288 = por %p286, %p287
      %p290 = scmp.ne.s32.totalorder %s275, %s289
      %p291 = scmp.eq.s32.totalorder %s31, 0
      %p292 = por %p290, %p291
      %s293 = ssub.s32 %s32, %s44
      %s294 = ssub.s32 %s33, %s40
      %s295 = sor.u32 %s293, %s294
      %p296 = scmp.eq.s32.totalorder %s295, 0
      %s298 = sadd.s32 %s297, 1
      %s299 = scalar_select %p296, %s297, %s298
      %p302 = pneg %p296
      %p303 = scmp.eq.s32.totalorder %s25, 1
      %p304 = por %p302, %p303
      %p305 = scmp.ne.s32.totalorder %s297, %s300
      %p306 = scmp.eq.s32.totalorder %s25, 0
      %p307 = por %p305, %p306
      %p308 = scmp.ne.s32.totalorder %s297, %s300
      %p309 = scmp.eq.s32.totalorder %s30, 1
      %p310 = por %p308, %p309
      %p311 = scmp.ne.s32.totalorder %s300, %s301
      %p312 = scmp.eq.s32.totalorder %s30, 0
      %p313 = por %p311, %p312
      %p314 = scmp.ne.s32.totalorder %s300, %s301
      %p315 = scmp.eq.s32.totalorder %s31, 1
      %p316 = por %p314, %p315
      %p318 = scmp.ne.s32.totalorder %s301, %s317
      %p319 = scmp.eq.s32.totalorder %s31, 0
      %p320 = por %p318, %p319
      %s321 = ssub.s32 %s32, %s44
      %s322 = ssub.s32 %s33, %s40
      %s323 = sor.u32 %s321, %s322
      %p324 = scmp.eq.s32.totalorder %s323, 0
      %s326 = sadd.s32 %s325, 1
      %s327 = scalar_select %p324, %s325, %s326
      %p330 = pneg %p324
      %p331 = scmp.eq.s32.totalorder %s25, 1
      %p332 = por %p330, %p331
      %p333 = scmp.ne.s32.totalorder %s325, %s328
      %p334 = scmp.eq.s32.totalorder %s25, 0
      %p335 = por %p333, %p334
      %p336 = scmp.ne.s32.totalorder %s325, %s328
      %p337 = scmp.eq.s32.totalorder %s30, 1
      %p338 = por %p336, %p337
      %p339 = scmp.ne.s32.totalorder %s328, %s329
      %p340 = scmp.eq.s32.totalorder %s30, 0
      %p341 = por %p339, %p340
      %p342 = scmp.ne.s32.totalorder %s328, %s329
      %p343 = scmp.eq.s32.totalorder %s31, 1
      %p344 = por %p342, %p343
      %p346 = scmp.ne.s32.totalorder %s329, %s345
      %p347 = scmp.eq.s32.totalorder %s31, 0
      %p348 = por %p346, %p347
      %p349 = scmp.le.s32.totalorder 1, %s25
      %p350 = scmp.lt.s32.totalorder %s25, 3
      %p351 = pnand %p349, %p350
      %p352 = pneg %p351
      // Predicated region
      $region9: #{tpu_custom_call.1} parent=5 // pred_check
        _
      $region10: #{tpu_custom_call.1} parent=5 // pred_check_branch
        %354 = sbr.rel (%p351) target = $region12
      $region11: #{tpu_custom_call.1} parent=5 // pred_region
        %s355 = ssub.s32 %s25, 1
        // Predicated region
        $region13: #{tpu_custom_call.1} parent=11 // pred_check
          %p356 = pneg %p138
        $region14: #{tpu_custom_call.1} parent=11 // pred_check_branch
          %358 = sbr.rel (%p356) target = $region16
        $region15: #{tpu_custom_call.1} parent=11 // pred_region
          _
        $region16: #{tpu_custom_call.1} parent=11 // pred_fallthru
          _
        // Predicated region
        $region17: #{tpu_custom_call.1} parent=11 // pred_check
          %p359 = pneg %p159
        $region18: #{tpu_custom_call.1} parent=11 // pred_check_branch
          %361 = sbr.rel (%p359) target = $region20
        $region19: #{tpu_custom_call.1} parent=11 // pred_region
          _
        $region20: #{tpu_custom_call.1} parent=11 // pred_fallthru
          _
        // Predicated region
        $region21: #{tpu_custom_call.1} parent=11 // pred_check
          %p362 = pneg %p180
        $region22: #{tpu_custom_call.1} parent=11 // pred_check_branch
          %364 = sbr.rel (%p362) target = $region24
        $region23: #{tpu_custom_call.1} parent=11 // pred_region
          _
        $region24: #{tpu_custom_call.1} parent=11 // pred_fallthru
          _
        // Predicated region
        $region25: #{tpu_custom_call.1} parent=11 // pred_check
          %p365 = pneg %p201
        $region26: #{tpu_custom_call.1} parent=11 // pred_check_branch
          %367 = sbr.rel (%p365) target = $region28
        $region27: #{tpu_custom_call.1} parent=11 // pred_region
          _
        $region28: #{tpu_custom_call.1} parent=11 // pred_fallthru
          _
        // Predicated region
        $region29: #{tpu_custom_call.1} parent=11 // pred_check
          %p368 = pneg %p222
        $region30: #{tpu_custom_call.1} parent=11 // pred_check_branch
          %370 = sbr.rel (%p368) target = $region32
        $region31: #{tpu_custom_call.1} parent=11 // pred_region
          _
        $region32: #{tpu_custom_call.1} parent=11 // pred_fallthru
          _
        // Predicated region
        $region33: #{tpu_custom_call.1} parent=11 // pred_check
          %p371 = pneg %p243
        $region34: #{tpu_custom_call.1} parent=11 // pred_check_branch
          %373 = sbr.rel (%p371) target = $region36
        $region35: #{tpu_custom_call.1} parent=11 // pred_region
          _
        $region36: #{tpu_custom_call.1} parent=11 // pred_fallthru
          _
        // Predicated region
        $region37: #{tpu_custom_call.1} parent=11 // pred_check
          %p374 = pneg %p264
        $region38: #{tpu_custom_call.1} parent=11 // pred_check_branch
          %376 = sbr.rel (%p374) target = $region40
        $region39: #{tpu_custom_call.1} parent=11 // pred_region
          _
        $region40: #{tpu_custom_call.1} parent=11 // pred_fallthru
          _
        // Predicated region
        $region41: #{tpu_custom_call.1} parent=11 // pred_check
          %p377 = pneg %p285
        $region42: #{tpu_custom_call.1} parent=11 // pred_check_branch
          %379 = sbr.rel (%p377) target = $region44
        $region43: #{tpu_custom_call.1} parent=11 // pred_region
          _
        $region44: #{tpu_custom_call.1} parent=11 // pred_fallthru
          _
      $region12: #{tpu_custom_call.1} parent=5 // pred_fallthru
        _
      %p380 = scmp.lt.s32.totalorder %s25, 2
      // Predicated region
      $region45: #{tpu_custom_call.1} parent=5 // pred_check
        %p381 = pneg %p380
      $region46: #{tpu_custom_call.1} parent=5 // pred_check_branch
        %383 = sbr.rel (%p381) target = $region48
      $region47: #{tpu_custom_call.1} parent=5 // pred_region
        // Predicated region
        $region49: #{tpu_custom_call.1} parent=47 // pred_check
          %p384 = pneg %p59
        $region50: #{tpu_custom_call.1} parent=47 // pred_check_branch
          %386 = sbr.rel (%p384) target = $region52
        $region51: #{tpu_custom_call.1} parent=47 // pred_region
          %p387 = scmp.lt.s32.totalorder %s32, 1
          %s388 = scalar_select %p387, %s32, 1
          %p389 = scmp.lt.s32.totalorder %s33, 0
          %s390 = scalar_select %p389, %s33, 0
          %s391 = sadd.s32 %s390, %s388
          %s392 = smul.addr %s391, 4
          %s393 = scalar_lea.vmem %s0, %s392
        $region52: #{tpu_custom_call.1} parent=47 // pred_fallthru
          _
        // Predicated region
        $region53: #{tpu_custom_call.1} parent=47 // pred_check
          %p394 = pneg %p85
        $region54: #{tpu_custom_call.1} parent=47 // pred_check_branch
          %396 = sbr.rel (%p394) target = $region56
        $region55: #{tpu_custom_call.1} parent=47 // pred_region
          %p397 = scmp.lt.s32.totalorder %s32, 1
          %s398 = scalar_select %p397, %s32, 1
          %s399 = smul.addr %s398, 4
          %s400 = scalar_lea.vmem %s1, %s399
        $region56: #{tpu_custom_call.1} parent=47 // pred_fallthru
          _
        // Predicated region
        $region57: #{tpu_custom_call.1} parent=47 // pred_check
          %p401 = pneg %p111
        $region58: #{tpu_custom_call.1} parent=47 // pred_check_branch
          %403 = sbr.rel (%p401) target = $region60
        $region59: #{tpu_custom_call.1} parent=47 // pred_region
          %p404 = scmp.lt.s32.totalorder %s32, 1
          %s405 = scalar_select %p404, %s32, 1
          %s406 = smul.addr %s405, 4
          %s407 = scalar_lea.vmem %s2, %s406
        $region60: #{tpu_custom_call.1} parent=47 // pred_fallthru
          _
      $region48: #{tpu_custom_call.1} parent=5 // pred_fallthru
        _
      %p408 = scmp.le.s32.totalorder 1, %s25
      %p409 = scmp.lt.s32.totalorder %s25, 3
      %p410 = pnand %p408, %p409
      %p411 = pneg %p410
      // Predicated region
      $region61: #{tpu_custom_call.1} parent=5 // pred_check
        _
      $region62: #{tpu_custom_call.1} parent=5 // pred_check_branch
        %413 = sbr.rel (%p410) target = $region64
      $region63: #{tpu_custom_call.1} parent=5 // pred_region
        %s414 = ssub.s32 %s25, 1
        %p415 = scmp.lt.s32.totalorder %s34, 1
        %s416 = scalar_select %p415, %s34, 1
        %p417 = scmp.lt.s32.totalorder %s35, 0
        %s418 = scalar_select %p417, %s35, 0
        %s419 = sadd.s32 %s418, %s416
        %s420 = smul.addr %s419, 4
        %s421 = scalar_lea.vmem %s0, %s420
        %p422 = pneg %p65
        %p423 = pneg %p62
        %p424 = scmp.lt.s32.totalorder %s34, 1
        %s425 = scalar_select %p424, %s34, 1
        %s426 = smul.addr %s425, 4
        %s427 = scalar_lea.vmem %s1, %s426
        %p428 = pneg %p91
        %p429 = pneg %p88
        %p430 = scmp.lt.s32.totalorder %s34, 1
        %s431 = scalar_select %p430, %s34, 1
        %s432 = smul.addr %s431, 4
        %s433 = scalar_lea.vmem %s2, %s432
        %p434 = pneg %p117
        %p435 = pneg %p114
        %p436 = pneg %p138
        %p437 = pneg %p135
        %p438 = pneg %p159
        %p439 = pneg %p156
        %p440 = pneg %p180
        %p441 = pneg %p177
        %p442 = pneg %p201
        %p443 = pneg %p198
        %p444 = pneg %p222
        %p445 = pneg %p219
        %p446 = pneg %p243
        %p447 = pneg %p240
        %p448 = pneg %p264
        %p449 = pneg %p261
        %p450 = pneg %p285
        %p451 = pneg %p282
        %p452 = pneg %p313
        %p453 = pneg %p310
        %s454 = sand.u32 %s300, 1
        %s455 = scalar_lea.sflag [#allocation3], %s454
        %s456 = sand.u32 %s300, 1
        %s457 = smul.addr %s456, 8
        %s458 = scalar_lea.vmem [#allocation2], %s457
        %p459 = pneg %p341
        %p460 = pneg %p338
        %s461 = sand.u32 %s328, 1
        %s462 = scalar_lea.sflag [#allocation5], %s461
        %s463 = sand.u32 %s328, 1
        %s464 = smul.addr %s463, 16
        %s465 = scalar_lea.vmem [#allocation4], %s464
        %p466 = scmp.lt.s32.totalorder %s34, 1
        %s467 = scalar_select %p466, %s34, 1
        %p468 = scmp.lt.s32.totalorder %s35, 0
        %s469 = scalar_select %p468, %s35, 0
        %s470 = sadd.s32 %s469, %s467
        %s471 = smul.addr %s470, 4
        %s472 = scalar_lea.vmem %s0, %s471
        %p473 = scmp.lt.s32.totalorder %s34, 1
        %s474 = scalar_select %p473, %s34, 1
        %s475 = smul.addr %s474, 4
        %s476 = scalar_lea.vmem %s1, %s475
        %p477 = scmp.lt.s32.totalorder %s34, 1
        %s478 = scalar_select %p477, %s34, 1
        %s479 = smul.addr %s478, 4
        %s480 = scalar_lea.vmem %s2, %s479
        %v482 = vld [vmem:[%s472] sm:$0xf]
        %v483 = vld [vmem:[%s476] sm:$0xf]
        %v484 = vld [vmem:[%s480] sm:$0xf]
        %v485 = vld [vmem:[%s3] sm:$0xf]
        %v486 = vld [vmem:[%s3 + $0x4] sm:$0xf]
        %v487 = vld [vmem:[%s3 + $0x8] sm:$0xf]
        %v488 = vld [vmem:[%s3 + $0xc] sm:$0xf]
        %v489 = vld [vmem:[%s4] sm:$0xff]
        %v490 = vld [vmem:[%s4 + $0x8] sm:$0xff]
        %v491 = vld [vmem:[%s4 + $0x10] sm:$0xff]
        %v492 = vld [vmem:[%s4 + $0x18] sm:$0xff]
        %494 = vset.pattern.permute.xlu0 0
        %495 = vperm.xlu0 %494, %v489
        %v496 = vpop.permute.xlu0 %495
        %499 = vset.pattern.permute.xlu0 0
        %500 = vperm.xlu0 %499, %v490
        %v501 = vpop.permute.xlu0 %500
        %504 = vset.pattern.permute.xlu0 0
        %505 = vperm.xlu0 %504, %v491
        %v506 = vpop.permute.xlu0 %505
        %509 = vset.pattern.permute.xlu0 0
        %510 = vperm.xlu0 %509, %v492
        %v511 = vpop.permute.xlu0 %510
        %v517 = vunpack.c.l.b16 %v485
        %v518 = vunpack.c.l.b16 %v486
        %v519 = vunpack.c.l.b16 %v487
        %v520 = vunpack.c.l.b16 %v488
        %v521 = vpack.c.b16 %v518, %v517
        %v522 = vpack.c.b16 %v520, %v519
        %vm523 = vcmask 261120
        %v525 = vsel %vm523, %v521, 0
        %v528 = vsel %vm523, %v522, 0
        %v531 = vsel %vm523, %v482, 0
        %533 = vmatprep.subr.bf16.mxu0 0
        %534 = vmatpush1.bf16.xpose.msra.mxu0 %v531
        %535 = vmatprep.subr.bf16.mxu0 0
        %536 = vmatpush1.bf16.xpose.msra.mxu0 0
        %537 = vmatprep.subr.bf16.mxu0 0
        %538 = vmatpush1.bf16.xpose.msra.mxu0 0
        %539 = vmatprep.subr.bf16.mxu0 0
        %540 = vmatpush1.bf16.xpose.msra.mxu0 0
        %541 = vmatprep.subr.bf16.mxu0 0
        %542 = vmatpush1.bf16.xpose.msra.mxu0 0
        %543 = vmatprep.subr.bf16.mxu0 0
        %544 = vmatpush1.bf16.xpose.msra.mxu0 0
        %545 = vmatprep.subr.bf16.mxu0 0
        %546 = vmatpush1.bf16.xpose.msra.mxu0 0
        %547 = vmatprep.subr.bf16.mxu0 0
        %548 = vmatpush1.bf16.xpose.msra.mxu0 0
        %549 = vmatprep.subr.bf16.mxu0 0
        %550 = vmatpush1.bf16.xpose.msra.mxu0 0
        %551 = vmatprep.subr.bf16.mxu0 0
        %552 = vmatpush1.bf16.xpose.msra.mxu0 0
        %553 = vmatprep.subr.bf16.mxu0 0
        %554 = vmatpush1.bf16.xpose.msra.mxu0 0
        %555 = vmatprep.subr.bf16.mxu0 0
        %556 = vmatpush1.bf16.xpose.msra.mxu0 0
        %557 = vmatprep.subr.bf16.mxu0 0
        %558 = vmatpush1.bf16.xpose.msra.mxu0 0
        %559 = vmatprep.subr.bf16.mxu0 0
        %560 = vmatpush1.bf16.xpose.msra.mxu0 0
        %561 = vmatprep.subr.bf16.mxu0 0
        %562 = vmatpush1.bf16.xpose.msra.mxu0 0
        %563 = vmatprep.subr.bf16.mxu0 0
        %564 = vmatpush1.bf16.xpose.msra.mxu0 0
        %565 = vmatprep.mubr.bf16.mxu0 0
        %566 = vmatmul.mubr.bf16.gmra.mrb[0].mxu0 %v525
        %v567 = vpop.f32.mrb[0].mxu0
        %v568 = vadd.f32 %v496, %v567
        %v569 = vpop.f32.mrb[0].mxu0
        %v570 = vpop.f32.mrb[0].mxu0
        %v571 = vadd.f32 %v501, %v570
        %v572 = vpop.f32.mrb[0].mxu0
        %573 = vmatprep.mubr.bf16.mxu0 0
        %574 = vmatmul.mubr.bf16.gmra.mrb[0].mxu0 %v528
        %v575 = vpop.f32.mrb[0].mxu0
        %v576 = vadd.f32 %v506, %v575
        %v577 = vpop.f32.mrb[0].mxu0
        %v578 = vpop.f32.mrb[0].mxu0
        %v579 = vadd.f32 %v511, %v578
        %v580 = vpop.f32.mrb[0].mxu0
        %581 = vdwg.mxu0
        %v582 = vld [vmem:[%s5] sm:$0xf]
        %v583 = vld [vmem:[%s5 + $0x4] sm:$0xf]
        %v584 = vld [vmem:[%s5 + $0x8] sm:$0xf]
        %v585 = vld [vmem:[%s5 + $0xc] sm:$0xf]
        %v586 = vld [vmem:[%s6] sm:$0xff]
        %v587 = vld [vmem:[%s6 + $0x8] sm:$0xff]
        %v588 = vld [vmem:[%s6 + $0x10] sm:$0xff]
        %v589 = vld [vmem:[%s6 + $0x18] sm:$0xff]
        %591 = vset.pattern.permute.xlu0 0
        %592 = vperm.xlu0 %591, %v586
        %v593 = vpop.permute.xlu0 %592
        %596 = vset.pattern.permute.xlu0 0
        %597 = vperm.xlu0 %596, %v587
        %v598 = vpop.permute.xlu0 %597
        %601 = vset.pattern.permute.xlu0 0
        %602 = vperm.xlu0 %601, %v588
        %v603 = vpop.permute.xlu0 %602
        %606 = vset.pattern.permute.xlu0 0
        %607 = vperm.xlu0 %606, %v589
        %v608 = vpop.permute.xlu0 %607
        %v614 = vunpack.c.l.b16 %v582
        %v615 = vunpack.c.l.b16 %v583
        %v616 = vunpack.c.l.b16 %v584
        %v617 = vunpack.c.l.b16 %v585
        %v618 = vpack.c.b16 %v615, %v614
        %v619 = vpack.c.b16 %v617, %v616
        %v621 = vsel %vm523, %v618, 0
        %v624 = vsel %vm523, %v619, 0
        %v627 = vsel %vm523, %v483, 0
        %629 = vmatprep.subr.bf16.mxu0 0
        %630 = vmatpush1.bf16.xpose.msra.mxu0 %v627
        %631 = vmatprep.subr.bf16.mxu0 0
        %632 = vmatpush1.bf16.xpose.msra.mxu0 0
        %633 = vmatprep.subr.bf16.mxu0 0
        %634 = vmatpush1.bf16.xpose.msra.mxu0 0
        %635 = vmatprep.subr.bf16.mxu0 0
        %636 = vmatpush1.bf16.xpose.msra.mxu0 0
        %637 = vmatprep.subr.bf16.mxu0 0
        %638 = vmatpush1.bf16.xpose.msra.mxu0 0
        %639 = vmatprep.subr.bf16.mxu0 0
        %640 = vmatpush1.bf16.xpose.msra.mxu0 0
        %641 = vmatprep.subr.bf16.mxu0 0
        %642 = vmatpush1.bf16.xpose.msra.mxu0 0
        %643 = vmatprep.subr.bf16.mxu0 0
        %644 = vmatpush1.bf16.xpose.msra.mxu0 0
        %645 = vmatprep.subr.bf16.mxu0 0
        %646 = vmatpush1.bf16.xpose.msra.mxu0 0
        %647 = vmatprep.subr.bf16.mxu0 0
        %648 = vmatpush1.bf16.xpose.msra.mxu0 0
        %649 = vmatprep.subr.bf16.mxu0 0
        %650 = vmatpush1.bf16.xpose.msra.mxu0 0
        %651 = vmatprep.subr.bf16.mxu0 0
        %652 = vmatpush1.bf16.xpose.msra.mxu0 0
        %653 = vmatprep.subr.bf16.mxu0 0
        %654 = vmatpush1.bf16.xpose.msra.mxu0 0
        %655 = vmatprep.subr.bf16.mxu0 0
        %656 = vmatpush1.bf16.xpose.msra.mxu0 0
        %657 = vmatprep.subr.bf16.mxu0 0
        %658 = vmatpush1.bf16.xpose.msra.mxu0 0
        %659 = vmatprep.subr.bf16.mxu0 0
        %660 = vmatpush1.bf16.xpose.msra.mxu0 0
        %661 = vmatprep.mubr.bf16.mxu0 0
        %662 = vmatmul.mubr.bf16.gmra.mrb[0].mxu0 %v621
        %v663 = vpop.f32.mrb[0].mxu0
        %v664 = vadd.f32 %v593, %v663
        %v665 = vpop.f32.mrb[0].mxu0
        %v666 = vpop.f32.mrb[0].mxu0
        %v667 = vadd.f32 %v598, %v666
        %v668 = vpop.f32.mrb[0].mxu0
        %669 = vmatprep.mubr.bf16.mxu0 0
        %670 = vmatmul.mubr.bf16.gmra.mrb[0].mxu0 %v624
        %v671 = vpop.f32.mrb[0].mxu0
        %v672 = vadd.f32 %v603, %v671
        %v673 = vpop.f32.mrb[0].mxu0
        %v674 = vpop.f32.mrb[0].mxu0
        %v675 = vadd.f32 %v608, %v674
        %v676 = vpop.f32.mrb[0].mxu0
        %677 = vdwg.mxu0
        %v678 = vld [vmem:[%s7] sm:$0xf]
        %v679 = vld [vmem:[%s7 + $0x4] sm:$0xf]
        %v680 = vld [vmem:[%s7 + $0x8] sm:$0xf]
        %v681 = vld [vmem:[%s7 + $0xc] sm:$0xf]
        %v682 = vld [vmem:[%s8] sm:$0xff]
        %v683 = vld [vmem:[%s8 + $0x8] sm:$0xff]
        %v684 = vld [vmem:[%s8 + $0x10] sm:$0xff]
        %v685 = vld [vmem:[%s8 + $0x18] sm:$0xff]
        %687 = vset.pattern.permute.xlu0 0
        %688 = vperm.xlu0 %687, %v682
        %v689 = vpop.permute.xlu0 %688
        %692 = vset.pattern.permute.xlu0 0
        %693 = vperm.xlu0 %692, %v683
        %v694 = vpop.permute.xlu0 %693
        %697 = vset.pattern.permute.xlu0 0
        %698 = vperm.xlu0 %697, %v684
        %v699 = vpop.permute.xlu0 %698
        %702 = vset.pattern.permute.xlu0 0
        %703 = vperm.xlu0 %702, %v685
        %v704 = vpop.permute.xlu0 %703
        %v710 = vunpack.c.l.b16 %v678
        %v711 = vunpack.c.l.b16 %v679
        %v712 = vunpack.c.l.b16 %v680
        %v713 = vunpack.c.l.b16 %v681
        %v714 = vpack.c.b16 %v711, %v710
        %v715 = vpack.c.b16 %v713, %v712
        %v717 = vsel %vm523, %v714, 0
        %v720 = vsel %vm523, %v715, 0
        %v723 = vsel %vm523, %v484, 0
        %725 = vmatprep.subr.bf16.mxu0 0
        %726 = vmatpush1.bf16.xpose.msra.mxu0 %v723
        %727 = vmatprep.subr.bf16.mxu0 0
        %728 = vmatpush1.bf16.xpose.msra.mxu0 0
        %729 = vmatprep.subr.bf16.mxu0 0
        %730 = vmatpush1.bf16.xpose.msra.mxu0 0
        %731 = vmatprep.subr.bf16.mxu0 0
        %732 = vmatpush1.bf16.xpose.msra.mxu0 0
        %733 = vmatprep.subr.bf16.mxu0 0
        %734 = vmatpush1.bf16.xpose.msra.mxu0 0
        %735 = vmatprep.subr.bf16.mxu0 0
        %736 = vmatpush1.bf16.xpose.msra.mxu0 0
        %737 = vmatprep.subr.bf16.mxu0 0
        %738 = vmatpush1.bf16.xpose.msra.mxu0 0
        %739 = vmatprep.subr.bf16.mxu0 0
        %740 = vmatpush1.bf16.xpose.msra.mxu0 0
        %741 = vmatprep.subr.bf16.mxu0 0
        %742 = vmatpush1.bf16.xpose.msra.mxu0 0
        %743 = vmatprep.subr.bf16.mxu0 0
        %744 = vmatpush1.bf16.xpose.msra.mxu0 0
        %745 = vmatprep.subr.bf16.mxu0 0
        %746 = vmatpush1.bf16.xpose.msra.mxu0 0
        %747 = vmatprep.subr.bf16.mxu0 0
        %748 = vmatpush1.bf16.xpose.msra.mxu0 0
        %749 = vmatprep.subr.bf16.mxu0 0
        %750 = vmatpush1.bf16.xpose.msra.mxu0 0
        %751 = vmatprep.subr.bf16.mxu0 0
        %752 = vmatpush1.bf16.xpose.msra.mxu0 0
        %753 = vmatprep.subr.bf16.mxu0 0
        %754 = vmatpush1.bf16.xpose.msra.mxu0 0
        %755 = vmatprep.subr.bf16.mxu0 0
        %756 = vmatpush1.bf16.xpose.msra.mxu0 0
        %757 = vmatprep.mubr.bf16.mxu0 0
        %758 = vmatmul.mubr.bf16.gmra.mrb[0].mxu0 %v717
        %v759 = vpop.f32.mrb[0].mxu0
        %v760 = vadd.f32 %v689, %v759
        %v761 = vpop.f32.mrb[0].mxu0
        %v762 = vpop.f32.mrb[0].mxu0
        %v763 = vadd.f32 %v694, %v762
        %v764 = vpop.f32.mrb[0].mxu0
        %765 = vmatprep.mubr.bf16.mxu0 0
        %766 = vmatmul.mubr.bf16.gmra.mrb[0].mxu0 %v720
        %v767 = vpop.f32.mrb[0].mxu0
        %v768 = vadd.f32 %v699, %v767
        %v769 = vpop.f32.mrb[0].mxu0
        %v770 = vpop.f32.mrb[0].mxu0
        %v771 = vadd.f32 %v704, %v770
        %v772 = vpop.f32.mrb[0].mxu0
        %773 = vdwg.mxu0
        %774 = vxpose.xlu0.b32.start [1/16] %v568, 128
        %775 = vxpose.xlu0.b32.cont [2/16] 0.0, 128
        %776 = vxpose.xlu0.b32.cont [3/16] 0.0, 128
        %777 = vxpose.xlu0.b32.cont [4/16] 0.0, 128
        %778 = vxpose.xlu0.b32.cont [5/16] 0.0, 128
        %779 = vxpose.xlu0.b32.cont [6/16] 0.0, 128
        %780 = vxpose.xlu0.b32.cont [7/16] 0.0, 128
        %781 = vxpose.xlu0.b32.cont [8/16] 0.0, 128
        %782 = vxpose.xlu0.b32.cont [9/16] 0.0, 128
        %783 = vxpose.xlu0.b32.cont [10/16] 0.0, 128
        %784 = vxpose.xlu0.b32.cont [11/16] 0.0, 128
        %785 = vxpose.xlu0.b32.cont [12/16] 0.0, 128
        %786 = vxpose.xlu0.b32.cont [13/16] 0.0, 128
        %787 = vxpose.xlu0.b32.cont [14/16] 0.0, 128
        %788 = vxpose.xlu0.b32.cont [15/16] 0.0, 128
        %789 = vxpose.xlu0.b32.end [16/16] 0.0, 128
        %v790 = vpop.trf.xlu0
        %v791 = vpop.trf.xlu0
        %v792 = vpop.trf.xlu0
        %v793 = vpop.trf.xlu0
        %v794 = vpop.trf.xlu0
        %v795 = vpop.trf.xlu0
        %v796 = vpop.trf.xlu0
        %v797 = vpop.trf.xlu0
        %v798 = vpop.trf.xlu0
        %v799 = vpop.trf.xlu0
        %v800 = vpop.trf.xlu0
        %v801 = vpop.trf.xlu0
        %v802 = vpop.trf.xlu0
        %v803 = vpop.trf.xlu0
        %v804 = vpop.trf.xlu0
        %v805 = vpop.trf.xlu0
        %v806 = vpack.c.bf16 %v790, %v790
        %v807 = vpack.c.bf16 %v664, %v664
        %v808 = vpack.c.bf16 %v760, %v760
        %vm809 = vcmask 64512
        %v811 = vsel %vm809, %v806, 0
        %vm813 = vcmask 1043456
        %v815 = vsel %vm813, %v807, 0
        %817 = vmatprep.subr.bf16.mxu0 0
        %818 = vmatpush1.bf16.msra.mxu0 %v815
        %819 = vmatprep.subr.bf16.mxu0 0
        %820 = vmatpush1.bf16.msra.mxu0 0
        %821 = vmatprep.subr.bf16.mxu0 0
        %822 = vmatpush1.bf16.msra.mxu0 0
        %823 = vmatprep.subr.bf16.mxu0 0
        %824 = vmatpush1.bf16.msra.mxu0 0
        %825 = vmatprep.subr.bf16.mxu0 0
        %826 = vmatpush1.bf16.msra.mxu0 0
        %827 = vmatprep.subr.bf16.mxu0 0
        %828 = vmatpush1.bf16.msra.mxu0 0
        %829 = vmatprep.subr.bf16.mxu0 0
        %830 = vmatpush1.bf16.msra.mxu0 0
        %831 = vmatprep.subr.bf16.mxu0 0
        %832 = vmatpush1.bf16.msra.mxu0 0
        %833 = vmatprep.subr.bf16.mxu0 0
        %834 = vmatpush1.bf16.msra.mxu0 0
        %835 = vmatprep.subr.bf16.mxu0 0
        %836 = vmatpush1.bf16.msra.mxu0 0
        %837 = vmatprep.subr.bf16.mxu0 0
        %838 = vmatpush1.bf16.msra.mxu0 0
        %839 = vmatprep.subr.bf16.mxu0 0
        %840 = vmatpush1.bf16.msra.mxu0 0
        %841 = vmatprep.subr.bf16.mxu0 0
        %842 = vmatpush1.bf16.msra.mxu0 0
        %843 = vmatprep.subr.bf16.mxu0 0
        %844 = vmatpush1.bf16.msra.mxu0 0
        %845 = vmatprep.subr.bf16.mxu0 0
        %846 = vmatpush1.bf16.msra.mxu0 0
        %847 = vmatprep.subr.bf16.mxu0 0
        %848 = vmatpush1.bf16.msra.mxu0 0
        %849 = vmatprep.mubr.bf16.mxu0 0
        %850 = vmatmul.mubr.bf16.gmra.mrb[0].mxu0 %v811
        %v851 = vpop.f32.mrb[0].mxu0
        %v852 = vadd.f32 0.0, %v851
        %v853 = vpop.f32.mrb[0].mxu0
        %v854 = vpop.f32.mrb[0].mxu0
        %v855 = vpop.f32.mrb[0].mxu0
        %856 = vdwg.mxu0
        %v857 = vsel %vm809, %v852, -inf
        %858 = vmax.xlane.f32.xlu0 %v857
        %v859 = vpop.xlane.xlu0 %858
        %v860 = vsub.f32 %v852, %v859
        %v861 = vmul.f32 %v860, 1.442695
        %v862 = vpow.pop %v861
        %v863 = vsel %vm809, %v862, 0.0
        %864 = vadd.xlane.f32.xlu0 %v863
        %v865 = vpop.xlane.xlu0 %864
        %v866 = vrcp.pop %v865
        %v867 = vmul.f32 %v862, %v866
        %v868 = vpack.c.bf16 %v867, %v867
        %vm869 = vcmask 60416
        %870 = vst.msk [vmem:[%s465] sm:$0xf] %vm869, %v868
        %v872 = vsel %vm809, %v808, 0
        %v875 = vsel %vm809, %v868, 0
        %877 = vmatprep.subr.bf16.mxu0 0
        %878 = vmatpush1.bf16.xpose.msra.mxu0 %v875
        %879 = vmatprep.subr.bf16.mxu0 0
        %880 = vmatpush1.bf16.xpose.msra.mxu0 0
        %881 = vmatprep.subr.bf16.mxu0 0
        %882 = vmatpush1.bf16.xpose.msra.mxu0 0
        %883 = vmatprep.subr.bf16.mxu0 0
        %884 = vmatpush1.bf16.xpose.msra.mxu0 0
        %885 = vmatprep.subr.bf16.mxu0 0
        %886 = vmatpush1.bf16.xpose.msra.mxu0 0
        %887 = vmatprep.subr.bf16.mxu0 0
        %888 = vmatpush1.bf16.xpose.msra.mxu0 0
        %889 = vmatprep.subr.bf16.mxu0 0
        %890 = vmatpush1.bf16.xpose.msra.mxu0 0
        %891 = vmatprep.subr.bf16.mxu0 0
        %892 = vmatpush1.bf16.xpose.msra.mxu0 0
        %893 = vmatprep.subr.bf16.mxu0 0
        %894 = vmatpush1.bf16.xpose.msra.mxu0 0
        %895 = vmatprep.subr.bf16.mxu0 0
        %896 = vmatpush1.bf16.xpose.msra.mxu0 0
        %897 = vmatprep.subr.bf16.mxu0 0
        %898 = vmatpush1.bf16.xpose.msra.mxu0 0
        %899 = vmatprep.subr.bf16.mxu0 0
        %900 = vmatpush1.bf16.xpose.msra.mxu0 0
        %901 = vmatprep.subr.bf16.mxu0 0
        %902 = vmatpush1.bf16.xpose.msra.mxu0 0
        %903 = vmatprep.subr.bf16.mxu0 0
        %904 = vmatpush1.bf16.xpose.msra.mxu0 0
        %905 = vmatprep.subr.bf16.mxu0 0
        %906 = vmatpush1.bf16.xpose.msra.mxu0 0
        %907 = vmatprep.subr.bf16.mxu0 0
        %908 = vmatpush1.bf16.xpose.msra.mxu0 0
        %909 = vmatprep.mubr.bf16.mxu0 0
        %910 = vmatmul.mubr.bf16.gmra.mrb[0].mxu0 %v872
        %v911 = vpop.f32.mrb[0].mxu0
        %v912 = vadd.f32 0.0, %v911
        %v913 = vpop.f32.mrb[0].mxu0
        %v914 = vpop.f32.mrb[0].mxu0
        %v915 = vpop.f32.mrb[0].mxu0
        %916 = vdwg.mxu0
        %917 = vxpose.xlu0.b32.start [1/16] %v571, 128
        %918 = vxpose.xlu0.b32.cont [2/16] 0.0, 128
        %919 = vxpose.xlu0.b32.cont [3/16] 0.0, 128
        %920 = vxpose.xlu0.b32.cont [4/16] 0.0, 128
        %921 = vxpose.xlu0.b32.cont [5/16] 0.0, 128
        %922 = vxpose.xlu0.b32.cont [6/16] 0.0, 128
        %923 = vxpose.xlu0.b32.cont [7/16] 0.0, 128
        %924 = vxpose.xlu0.b32.cont [8/16] 0.0, 128
        %925 = vxpose.xlu0.b32.cont [9/16] 0.0, 128
        %926 = vxpose.xlu0.b32.cont [10/16] 0.0, 128
        %927 = vxpose.xlu0.b32.cont [11/16] 0.0, 128
        %928 = vxpose.xlu0.b32.cont [12/16] 0.0, 128
        %929 = vxpose.xlu0.b32.cont [13/16] 0.0, 128
        %930 = vxpose.xlu0.b32.cont [14/16] 0.0, 128
        %931 = vxpose.xlu0.b32.cont [15/16] 0.0, 128
        %932 = vxpose.xlu0.b32.end [16/16] 0.0, 128
        %v933 = vpop.trf.xlu0
        %v934 = vpop.trf.xlu0
        %v935 = vpop.trf.xlu0
        %v936 = vpop.trf.xlu0
        %v937 = vpop.trf.xlu0
        %v938 = vpop.trf.xlu0
        %v939 = vpop.trf.xlu0
        %v940 = vpop.trf.xlu0
        %v941 = vpop.trf.xlu0
        %v942 = vpop.trf.xlu0
        %v943 = vpop.trf.xlu0
        %v944 = vpop.trf.xlu0
        %v945 = vpop.trf.xlu0
        %v946 = vpop.trf.xlu0
        %v947 = vpop.trf.xlu0
        %v948 = vpop.trf.xlu0
        %v949 = vpack.c.bf16 %v933, %v933
        %v950 = vpack.c.bf16 %v667, %v667
        %v951 = vpack.c.bf16 %v763, %v763
        %v953 = vsel %vm809, %v949, 0
        %v956 = vsel %vm813, %v950, 0
        %958 = vmatprep.subr.bf16.mxu0 0
        %959 = vmatpush1.bf16.msra.mxu0 %v956
        %960 = vmatprep.subr.bf16.mxu0 0
        %961 = vmatpush1.bf16.msra.mxu0 0
        %962 = vmatprep.subr.bf16.mxu0 0
        %963 = vmatpush1.bf16.msra.mxu0 0
        %964 = vmatprep.subr.bf16.mxu0 0
        %965 = vmatpush1.bf16.msra.mxu0 0
        %966 = vmatprep.subr.bf16.mxu0 0
        %967 = vmatpush1.bf16.msra.mxu0 0
        %968 = vmatprep.subr.bf16.mxu0 0
        %969 = vmatpush1.bf16.msra.mxu0 0
        %970 = vmatprep.subr.bf16.mxu0 0
        %971 = vmatpush1.bf16.msra.mxu0 0
        %972 = vmatprep.subr.bf16.mxu0 0
        %973 = vmatpush1.bf16.msra.mxu0 0
        %974 = vmatprep.subr.bf16.mxu0 0
        %975 = vmatpush1.bf16.msra.mxu0 0
        %976 = vmatprep.subr.bf16.mxu0 0
        %977 = vmatpush1.bf16.msra.mxu0 0
        %978 = vmatprep.subr.bf16.mxu0 0
        %979 = vmatpush1.bf16.msra.mxu0 0
        %980 = vmatprep.subr.bf16.mxu0 0
        %981 = vmatpush1.bf16.msra.mxu0 0
        %982 = vmatprep.subr.bf16.mxu0 0
        %983 = vmatpush1.bf16.msra.mxu0 0
        %984 = vmatprep.subr.bf16.mxu0 0
        %985 = vmatpush1.bf16.msra.mxu0 0
        %986 = vmatprep.subr.bf16.mxu0 0
        %987 = vmatpush1.bf16.msra.mxu0 0
        %988 = vmatprep.subr.bf16.mxu0 0
        %989 = vmatpush1.bf16.msra.mxu0 0
        %990 = vmatprep.mubr.bf16.mxu0 0
        %991 = vmatmul.mubr.bf16.gmra.mrb[0].mxu0 %v953
        %v992 = vpop.f32.mrb[0].mxu0
        %v993 = vadd.f32 0.0, %v992
        %v994 = vpop.f32.mrb[0].mxu0
        %v995 = vpop.f32.mrb[0].mxu0
        %v996 = vpop.f32.mrb[0].mxu0
        %997 = vdwg.mxu0
        %v998 = vsel %vm809, %v993, -inf
        %999 = vmax.xlane.f32.xlu0 %v998
        %v1000 = vpop.xlane.xlu0 %999
        %v1001 = vsub.f32 %v993, %v1000
        %v1002 = vmul.f32 %v1001, 1.442695
        %v1003 = vpow.pop %v1002
        %v1004 = vsel %vm809, %v1003, 0.0
        %1005 = vadd.xlane.f32.xlu0 %v1004
        %v1006 = vpop.xlane.xlu0 %1005
        %v1007 = vrcp.pop %v1006
        %v1008 = vmul.f32 %v1003, %v1007
        %v1009 = vpack.c.bf16 %v1008, %v1008
        %s1010 = scalar_lea.vmem %s465, 4 [#allocation4]
        %1011 = vst.msk [vmem:[%s1010] sm:$0xf] %vm869, %v1009
        %v1013 = vsel %vm809, %v951, 0
        %v1016 = vsel %vm809, %v1009, 0
        %1018 = vmatprep.subr.bf16.mxu0 0
        %1019 = vmatpush1.bf16.xpose.msra.mxu0 %v1016
        %1020 = vmatprep.subr.bf16.mxu0 0
        %1021 = vmatpush1.bf16.xpose.msra.mxu0 0
        %1022 = vmatprep.subr.bf16.mxu0 0
        %1023 = vmatpush1.bf16.xpose.msra.mxu0 0
        %1024 = vmatprep.subr.bf16.mxu0 0
        %1025 = vmatpush1.bf16.xpose.msra.mxu0 0
        %1026 = vmatprep.subr.bf16.mxu0 0
        %1027 = vmatpush1.bf16.xpose.msra.mxu0 0
        %1028 = vmatprep.subr.bf16.mxu0 0
        %1029 = vmatpush1.bf16.xpose.msra.mxu0 0
        %1030 = vmatprep.subr.bf16.mxu0 0
        %1031 = vmatpush1.bf16.xpose.msra.mxu0 0
        %1032 = vmatprep.subr.bf16.mxu0 0
        %1033 = vmatpush1.bf16.xpose.msra.mxu0 0
        %1034 = vmatprep.subr.bf16.mxu0 0
        %1035 = vmatpush1.bf16.xpose.msra.mxu0 0
        %1036 = vmatprep.subr.bf16.mxu0 0
        %1037 = vmatpush1.bf16.xpose.msra.mxu0 0
        %1038 = vmatprep.subr.bf16.mxu0 0
        %1039 = vmatpush1.bf16.xpose.msra.mxu0 0
        %1040 = vmatprep.subr.bf16.mxu0 0
        %1041 = vmatpush1.bf16.xpose.msra.mxu0 0
        %1042 = vmatprep.subr.bf16.mxu0 0
        %1043 = vmatpush1.bf16.xpose.msra.mxu0 0
        %1044 = vmatprep.subr.bf16.mxu0 0
        %1045 = vmatpush1.bf16.xpose.msra.mxu0 0
        %1046 = vmatprep.subr.bf16.mxu0 0
        %1047 = vmatpush1.bf16.xpose.msra.mxu0 0
        %1048 = vmatprep.subr.bf16.mxu0 0
        %1049 = vmatpush1.bf16.xpose.msra.mxu0 0
        %1050 = vmatprep.mubr.bf16.mxu0 0
        %1051 = vmatmul.mubr.bf16.gmra.mrb[0].mxu0 %v1013
        %v1052 = vpop.f32.mrb[0].mxu0
        %v1053 = vadd.f32 0.0, %v1052
        %v1054 = vpop.f32.mrb[0].mxu0
        %v1055 = vpop.f32.mrb[0].mxu0
        %v1056 = vpop.f32.mrb[0].mxu0
        %1057 = vdwg.mxu0
        %1058 = vxpose.xlu0.b32.start [1/16] %v576, 128
        %1059 = vxpose.xlu0.b32.cont [2/16] 0.0, 128
        %1060 = vxpose.xlu0.b32.cont [3/16] 0.0, 128
        %1061 = vxpose.xlu0.b32.cont [4/16] 0.0, 128
        %1062 = vxpose.xlu0.b32.cont [5/16] 0.0, 128
        %1063 = vxpose.xlu0.b32.cont [6/16] 0.0, 128
        %1064 = vxpose.xlu0.b32.cont [7/16] 0.0, 128
        %1065 = vxpose.xlu0.b32.cont [8/16] 0.0, 128
        %1066 = vxpose.xlu0.b32.cont [9/16] 0.0, 128
        %1067 = vxpose.xlu0.b32.cont [10/16] 0.0, 128
        %1068 = vxpose.xlu0.b32.cont [11/16] 0.0, 128
        %1069 = vxpose.xlu0.b32.cont [12/16] 0.0, 128
        %1070 = vxpose.xlu0.b32.cont [13/16] 0.0, 128
        %1071 = vxpose.xlu0.b32.cont [14/16] 0.0, 128
        %1072 = vxpose.xlu0.b32.cont [15/16] 0.0, 128
        %1073 = vxpose.xlu0.b32.end [16/16] 0.0, 128
        %v1074 = vpop.trf.xlu0
        %v1075 = vpop.trf.xlu0
        %v1076 = vpop.trf.xlu0
        %v1077 = vpop.trf.xlu0
        %v1078 = vpop.trf.xlu0
        %v1079 = vpop.trf.xlu0
        %v1080 = vpop.trf.xlu0
        %v1081 = vpop.trf.xlu0
        %v1082 = vpop.trf.xlu0
        %v1083 = vpop.trf.xlu0
        %v1084 = vpop.trf.xlu0
        %v1085 = vpop.trf.xlu0
        %v1086 = vpop.trf.xlu0
        %v1087 = vpop.trf.xlu0
        %v1088 = vpop.trf.xlu0
        %v1089 = vpop.trf.xlu0
        %v1090 = vpack.c.bf16 %v1074, %v1074
        %v1091 = vpack.c.bf16 %v672, %v672
        %v1092 = vpack.c.bf16 %v768, %v768
        %v1094 = vsel %vm809, %v1090, 0
        %v1097 = vsel %vm813, %v1091, 0
        %1099 = vmatprep.subr.bf16.mxu0 0
        %1100 = vmatpush1.bf16.msra.mxu0 %v1097
        %1101 = vmatprep.subr.bf16.mxu0 0
        %1102 = vmatpush1.bf16.msra.mxu0 0
        %1103 = vmatprep.subr.bf16.mxu0 0
        %1104 = vmatpush1.bf16.msra.mxu0 0
        %1105 = vmatprep.subr.bf16.mxu0 0
        %1106 = vmatpush1.bf16.msra.mxu0 0
        %1107 = vmatprep.subr.bf16.mxu0 0
        %1108 = vmatpush1.bf16.msra.mxu0 0
        %1109 = vmatprep.subr.bf16.mxu0 0
        %1110 = vmatpush1.bf16.msra.mxu0 0
        %1111 = vmatprep.subr.bf16.mxu0 0
        %1112 = vmatpush1.bf16.msra.mxu0 0
        %1113 = vmatprep.subr.bf16.mxu0 0
        %1114 = vmatpush1.bf16.msra.mxu0 0
        %1115 = vmatprep.subr.bf16.mxu0 0
        %1116 = vmatpush1.bf16.msra.mxu0 0
        %1117 = vmatprep.subr.bf16.mxu0 0
        %1118 = vmatpush1.bf16.msra.mxu0 0
        %1119 = vmatprep.subr.bf16.mxu0 0
        %1120 = vmatpush1.bf16.msra.mxu0 0
        %1121 = vmatprep.subr.bf16.mxu0 0
        %1122 = vmatpush1.bf16.msra.mxu0 0
        %1123 = vmatprep.subr.bf16.mxu0 0
        %1124 = vmatpush1.bf16.msra.mxu0 0
        %1125 = vmatprep.subr.bf16.mxu0 0
        %1126 = vmatpush1.bf16.msra.mxu0 0
        %1127 = vmatprep.subr.bf16.mxu0 0
        %1128 = vmatpush1.bf16.msra.mxu0 0
        %1129 = vmatprep.subr.bf16.mxu0 0
        %1130 = vmatpush1.bf16.msra.mxu0 0
        %1131 = vmatprep.mubr.bf16.mxu0 0
        %1132 = vmatmul.mubr.bf16.gmra.mrb[0].mxu0 %v1094
        %v1133 = vpop.f32.mrb[0].mxu0
        %v1134 = vadd.f32 0.0, %v1133
        %v1135 = vpop.f32.mrb[0].mxu0
        %v1136 = vpop.f32.mrb[0].mxu0
        %v1137 = vpop.f32.mrb[0].mxu0
        %1138 = vdwg.mxu0
        %v1139 = vsel %vm809, %v1134, -inf
        %1140 = vmax.xlane.f32.xlu0 %v1139
        %v1141 = vpop.xlane.xlu0 %1140
        %v1142 = vsub.f32 %v1134, %v1141
        %v1143 = vmul.f32 %v1142, 1.442695
        %v1144 = vpow.pop %v1143
        %v1145 = vsel %vm809, %v1144, 0.0
        %1146 = vadd.xlane.f32.xlu0 %v1145
        %v1147 = vpop.xlane.xlu0 %1146
        %v1148 = vrcp.pop %v1147
        %v1149 = vmul.f32 %v1144, %v1148
        %v1150 = vpack.c.bf16 %v1149, %v1149
        %s1151 = scalar_lea.vmem %s465, 8 [#allocation4]
        %1152 = vst.msk [vmem:[%s1151] sm:$0xf] %vm869, %v1150
        %v1154 = vsel %vm809, %v1092, 0
        %v1157 = vsel %vm809, %v1150, 0
        %1159 = vmatprep.subr.bf16.mxu0 0
        %1160 = vmatpush1.bf16.xpose.msra.mxu0 %v1157
        %1161 = vmatprep.subr.bf16.mxu0 0
        %1162 = vmatpush1.bf16.xpose.msra.mxu0 0
        %1163 = vmatprep.subr.bf16.mxu0 0
        %1164 = vmatpush1.bf16.xpose.msra.mxu0 0
        %1165 = vmatprep.subr.bf16.mxu0 0
        %1166 = vmatpush1.bf16.xpose.msra.mxu0 0
        %1167 = vmatprep.subr.bf16.mxu0 0
        %1168 = vmatpush1.bf16.xpose.msra.mxu0 0
        %1169 = vmatprep.subr.bf16.mxu0 0
        %1170 = vmatpush1.bf16.xpose.msra.mxu0 0
        %1171 = vmatprep.subr.bf16.mxu0 0
        %1172 = vmatpush1.bf16.xpose.msra.mxu0 0
        %1173 = vmatprep.subr.bf16.mxu0 0
        %1174 = vmatpush1.bf16.xpose.msra.mxu0 0
        %1175 = vmatprep.subr.bf16.mxu0 0
        %1176 = vmatpush1.bf16.xpose.msra.mxu0 0
        %1177 = vmatprep.subr.bf16.mxu0 0
        %1178 = vmatpush1.bf16.xpose.msra.mxu0 0
        %1179 = vmatprep.subr.bf16.mxu0 0
        %1180 = vmatpush1.bf16.xpose.msra.mxu0 0
        %1181 = vmatprep.subr.bf16.mxu0 0
        %1182 = vmatpush1.bf16.xpose.msra.mxu0 0
        %1183 = vmatprep.subr.bf16.mxu0 0
        %1184 = vmatpush1.bf16.xpose.msra.mxu0 0
        %1185 = vmatprep.subr.bf16.mxu0 0
        %1186 = vmatpush1.bf16.xpose.msra.mxu0 0
        %1187 = vmatprep.subr.bf16.mxu0 0
        %1188 = vmatpush1.bf16.xpose.msra.mxu0 0
        %1189 = vmatprep.subr.bf16.mxu0 0
        %1190 = vmatpush1.bf16.xpose.msra.mxu0 0
        %1191 = vmatprep.mubr.bf16.mxu0 0
        %1192 = vmatmul.mubr.bf16.gmra.mrb[0].mxu0 %v1154
        %v1193 = vpop.f32.mrb[0].mxu0
        %v1194 = vadd.f32 0.0, %v1193
        %v1195 = vpop.f32.mrb[0].mxu0
        %v1196 = vpop.f32.mrb[0].mxu0
        %v1197 = vpop.f32.mrb[0].mxu0
        %1198 = vdwg.mxu0
        %1199 = vxpose.xlu0.b32.start [1/16] %v579, 128
        %1200 = vxpose.xlu0.b32.cont [2/16] 0.0, 128
        %1201 = vxpose.xlu0.b32.cont [3/16] 0.0, 128
        %1202 = vxpose.xlu0.b32.cont [4/16] 0.0, 128
        %1203 = vxpose.xlu0.b32.cont [5/16] 0.0, 128
        %1204 = vxpose.xlu0.b32.cont [6/16] 0.0, 128
        %1205 = vxpose.xlu0.b32.cont [7/16] 0.0, 128
        %1206 = vxpose.xlu0.b32.cont [8/16] 0.0, 128
        %1207 = vxpose.xlu0.b32.cont [9/16] 0.0, 128
        %1208 = vxpose.xlu0.b32.cont [10/16] 0.0, 128
        %1209 = vxpose.xlu0.b32.cont [11/16] 0.0, 128
        %1210 = vxpose.xlu0.b32.cont [12/16] 0.0, 128
        %1211 = vxpose.xlu0.b32.cont [13/16] 0.0, 128
        %1212 = vxpose.xlu0.b32.cont [14/16] 0.0, 128
        %1213 = vxpose.xlu0.b32.cont [15/16] 0.0, 128
        %1214 = vxpose.xlu0.b32.end [16/16] 0.0, 128
        %v1215 = vpop.trf.xlu0
        %v1216 = vpop.trf.xlu0
        %v1217 = vpop.trf.xlu0
        %v1218 = vpop.trf.xlu0
        %v1219 = vpop.trf.xlu0
        %v1220 = vpop.trf.xlu0
        %v1221 = vpop.trf.xlu0
        %v1222 = vpop.trf.xlu0
        %v1223 = vpop.trf.xlu0
        %v1224 = vpop.trf.xlu0
        %v1225 = vpop.trf.xlu0
        %v1226 = vpop.trf.xlu0
        %v1227 = vpop.trf.xlu0
        %v1228 = vpop.trf.xlu0
        %v1229 = vpop.trf.xlu0
        %v1230 = vpop.trf.xlu0
        %v1231 = vpack.c.bf16 %v1215, %v1215
        %v1232 = vpack.c.bf16 %v675, %v675
        %v1233 = vpack.c.bf16 %v771, %v771
        %v1235 = vsel %vm809, %v1231, 0
        %v1238 = vsel %vm813, %v1232, 0
        %1240 = vmatprep.subr.bf16.mxu0 0
        %1241 = vmatpush1.bf16.msra.mxu0 %v1238
        %1242 = vmatprep.subr.bf16.mxu0 0
        %1243 = vmatpush1.bf16.msra.mxu0 0
        %1244 = vmatprep.subr.bf16.mxu0 0
        %1245 = vmatpush1.bf16.msra.mxu0 0
        %1246 = vmatprep.subr.bf16.mxu0 0
        %1247 = vmatpush1.bf16.msra.mxu0 0
        %1248 = vmatprep.subr.bf16.mxu0 0
        %1249 = vmatpush1.bf16.msra.mxu0 0
        %1250 = vmatprep.subr.bf16.mxu0 0
        %1251 = vmatpush1.bf16.msra.mxu0 0
        %1252 = vmatprep.subr.bf16.mxu0 0
        %1253 = vmatpush1.bf16.msra.mxu0 0
        %1254 = vmatprep.subr.bf16.mxu0 0
        %1255 = vmatpush1.bf16.msra.mxu0 0
        %1256 = vmatprep.subr.bf16.mxu0 0
        %1257 = vmatpush1.bf16.msra.mxu0 0
        %1258 = vmatprep.subr.bf16.mxu0 0
        %1259 = vmatpush1.bf16.msra.mxu0 0
        %1260 = vmatprep.subr.bf16.mxu0 0
        %1261 = vmatpush1.bf16.msra.mxu0 0
        %1262 = vmatprep.subr.bf16.mxu0 0
        %1263 = vmatpush1.bf16.msra.mxu0 0
        %1264 = vmatprep.subr.bf16.mxu0 0
        %1265 = vmatpush1.bf16.msra.mxu0 0
        %1266 = vmatprep.subr.bf16.mxu0 0
        %1267 = vmatpush1.bf16.msra.mxu0 0
        %1268 = vmatprep.subr.bf16.mxu0 0
        %1269 = vmatpush1.bf16.msra.mxu0 0
        %1270 = vmatprep.subr.bf16.mxu0 0
        %1271 = vmatpush1.bf16.msra.mxu0 0
        %1272 = vmatprep.mubr.bf16.mxu0 0
        %1273 = vmatmul.mubr.bf16.gmra.mrb[0].mxu0 %v1235
        %v1274 = vpop.f32.mrb[0].mxu0
        %v1275 = vadd.f32 0.0, %v1274
        %v1276 = vpop.f32.mrb[0].mxu0
        %v1277 = vpop.f32.mrb[0].mxu0
        %v1278 = vpop.f32.mrb[0].mxu0
        %1279 = vdwg.mxu0
        %v1280 = vsel %vm809, %v1275, -inf
        %1281 = vmax.xlane.f32.xlu0 %v1280
        %v1282 = vpop.xlane.xlu0 %1281
        %v1283 = vsub.f32 %v1275, %v1282
        %v1284 = vmul.f32 %v1283, 1.442695
        %v1285 = vpow.pop %v1284
        %v1286 = vsel %vm809, %v1285, 0.0
        %1287 = vadd.xlane.f32.xlu0 %v1286
        %v1288 = vpop.xlane.xlu0 %1287
        %v1289 = vrcp.pop %v1288
        %v1290 = vmul.f32 %v1285, %v1289
        %v1291 = vpack.c.bf16 %v1290, %v1290
        %s1292 = scalar_lea.vmem %s465, 12 [#allocation4]
        %1293 = vst.msk [vmem:[%s1292] sm:$0xf] %vm869, %v1291
        %v1295 = vsel %vm809, %v1233, 0
        %v1298 = vsel %vm809, %v1291, 0
        %1300 = vmatprep.subr.bf16.mxu0 0
        %1301 = vmatpush1.bf16.xpose.msra.mxu0 %v1298
        %1302 = vmatprep.subr.bf16.mxu0 0
        %1303 = vmatpush1.bf16.xpose.msra.mxu0 0
        %1304 = vmatprep.subr.bf16.mxu0 0
        %1305 = vmatpush1.bf16.xpose.msra.mxu0 0
        %1306 = vmatprep.subr.bf16.mxu0 0
        %1307 = vmatpush1.bf16.xpose.msra.mxu0 0
        %1308 = vmatprep.subr.bf16.mxu0 0
        %1309 = vmatpush1.bf16.xpose.msra.mxu0 0
        %1310 = vmatprep.subr.bf16.mxu0 0
        %1311 = vmatpush1.bf16.xpose.msra.mxu0 0
        %1312 = vmatprep.subr.bf16.mxu0 0
        %1313 = vmatpush1.bf16.xpose.msra.mxu0 0
        %1314 = vmatprep.subr.bf16.mxu0 0
        %1315 = vmatpush1.bf16.xpose.msra.mxu0 0
        %1316 = vmatprep.subr.bf16.mxu0 0
        %1317 = vmatpush1.bf16.xpose.msra.mxu0 0
        %1318 = vmatprep.subr.bf16.mxu0 0
        %1319 = vmatpush1.bf16.xpose.msra.mxu0 0
        %1320 = vmatprep.subr.bf16.mxu0 0
        %1321 = vmatpush1.bf16.xpose.msra.mxu0 0
        %1322 = vmatprep.subr.bf16.mxu0 0
        %1323 = vmatpush1.bf16.xpose.msra.mxu0 0
        %1324 = vmatprep.subr.bf16.mxu0 0
        %1325 = vmatpush1.bf16.xpose.msra.mxu0 0
        %1326 = vmatprep.subr.bf16.mxu0 0
        %1327 = vmatpush1.bf16.xpose.msra.mxu0 0
        %1328 = vmatprep.subr.bf16.mxu0 0
        %1329 = vmatpush1.bf16.xpose.msra.mxu0 0
        %1330 = vmatprep.subr.bf16.mxu0 0
        %1331 = vmatpush1.bf16.xpose.msra.mxu0 0
        %1332 = vmatprep.mubr.bf16.mxu0 0
        %1333 = vmatmul.mubr.bf16.gmra.mrb[0].mxu0 %v1295
        %v1334 = vpop.f32.mrb[0].mxu0
        %v1335 = vadd.f32 0.0, %v1334
        %v1336 = vpop.f32.mrb[0].mxu0
        %v1337 = vpop.f32.mrb[0].mxu0
        %v1338 = vpop.f32.mrb[0].mxu0
        %1339 = vdwg.mxu0
        %v1340 = vpack.c.bf16 %v1053, %v912
        %v1341 = vpack.c.bf16 %v1335, %v1194
        %v1342 = vld [vmem:[%s9] sm:$0xf]
        %v1343 = vld [vmem:[%s9 + $0x4] sm:$0xf]
        %v1344 = vld [vmem:[%s9 + $0x8] sm:$0xf]
        %v1345 = vld [vmem:[%s9 + $0xc] sm:$0xf]
        %v1346 = vld [vmem:[%s10] sm:$0xff]
        %v1347 = vld [vmem:[%s10 + $0x8] sm:$0xff]
        %v1348 = vld [vmem:[%s10 + $0x10] sm:$0xff]
        %v1349 = vld [vmem:[%s10 + $0x18] sm:$0xff]
        %1351 = vset.pattern.permute.xlu0 0
        %1352 = vperm.xlu0 %1351, %v1346
        %v1353 = vpop.permute.xlu0 %1352
        %1356 = vset.pattern.permute.xlu0 0
        %1357 = vperm.xlu0 %1356, %v1347
        %v1358 = vpop.permute.xlu0 %1357
        %1361 = vset.pattern.permute.xlu0 0
        %1362 = vperm.xlu0 %1361, %v1348
        %v1363 = vpop.permute.xlu0 %1362
        %1366 = vset.pattern.permute.xlu0 0
        %1367 = vperm.xlu0 %1366, %v1349
        %v1368 = vpop.permute.xlu0 %1367
        %v1374 = vunpack.c.l.b16 %v1342
        %v1375 = vunpack.c.l.b16 %v1343
        %v1376 = vunpack.c.l.b16 %v1344
        %v1377 = vunpack.c.l.b16 %v1345
        %v1378 = vpack.c.b16 %v1375, %v1374
        %v1379 = vpack.c.b16 %v1377, %v1376
        %v1381 = vsel %vm523, %v1378, 0
        %v1384 = vsel %vm523, %v1379, 0
        %1386 = vmatprep.subr.bf16.mxu0 0
        %1387 = vmatpush1.bf16.msra.mxu0 %v1340
        %1388 = vmatprep.subr.bf16.mxu0 0
        %1389 = vmatpush1.bf16.msra.mxu0 %v1341
        %1390 = vmatprep.subr.bf16.mxu0 0
        %1391 = vmatpush1.bf16.msra.mxu0 0
        %1392 = vmatprep.subr.bf16.mxu0 0
        %1393 = vmatpush1.bf16.msra.mxu0 0
        %1394 = vmatprep.subr.bf16.mxu0 0
        %1395 = vmatpush1.bf16.msra.mxu0 0
        %1396 = vmatprep.subr.bf16.mxu0 0
        %1397 = vmatpush1.bf16.msra.mxu0 0
        %1398 = vmatprep.subr.bf16.mxu0 0
        %1399 = vmatpush1.bf16.msra.mxu0 0
        %1400 = vmatprep.subr.bf16.mxu0 0
        %1401 = vmatpush1.bf16.msra.mxu0 0
        %1402 = vmatprep.subr.bf16.mxu0 0
        %1403 = vmatpush1.bf16.msra.mxu0 0
        %1404 = vmatprep.subr.bf16.mxu0 0
        %1405 = vmatpush1.bf16.msra.mxu0 0
        %1406 = vmatprep.subr.bf16.mxu0 0
        %1407 = vmatpush1.bf16.msra.mxu0 0
        %1408 = vmatprep.subr.bf16.mxu0 0
        %1409 = vmatpush1.bf16.msra.mxu0 0
        %1410 = vmatprep.subr.bf16.mxu0 0
        %1411 = vmatpush1.bf16.msra.mxu0 0
        %1412 = vmatprep.subr.bf16.mxu0 0
        %1413 = vmatpush1.bf16.msra.mxu0 0
        %1414 = vmatprep.subr.bf16.mxu0 0
        %1415 = vmatpush1.bf16.msra.mxu0 0
        %1416 = vmatprep.subr.bf16.mxu0 0
        %1417 = vmatpush1.bf16.msra.mxu0 0
        %1418 = vmatprep.mubr.bf16.mxu0 0
        %1419 = vmatmul.mubr.bf16.gmra.mrb[0].mxu0 %v1381
        %v1420 = vpop.f32.mrb[0].mxu0
        %v1421 = vadd.f32 %v1353, %v1420
        %v1422 = vpop.f32.mrb[0].mxu0
        %v1423 = vpop.f32.mrb[0].mxu0
        %v1424 = vadd.f32 %v1358, %v1423
        %v1425 = vpop.f32.mrb[0].mxu0
        %1426 = vmatprep.mubr.bf16.mxu0 0
        %1427 = vmatmul.mubr.bf16.gmra.mrb[0].mxu0 %v1384
        %v1428 = vpop.f32.mrb[0].mxu0
        %v1429 = vadd.f32 %v1363, %v1428
        %v1430 = vpop.f32.mrb[0].mxu0
        %v1431 = vpop.f32.mrb[0].mxu0
        %v1432 = vadd.f32 %v1368, %v1431
        %v1433 = vpop.f32.mrb[0].mxu0
        %1434 = vdwg.mxu0
        %1435 = vxpose.xlu0.b32.start [1/16] %v1421, 128
        %1436 = vxpose.xlu0.b32.cont [2/16] %v1424, 128
        %1437 = vxpose.xlu0.b32.cont [3/16] %v1429, 128
        %1438 = vxpose.xlu0.b32.cont [4/16] %v1432, 128
        %1439 = vxpose.xlu0.b32.cont [5/16] 0.0, 128
        %1440 = vxpose.xlu0.b32.cont [6/16] 0.0, 128
        %1441 = vxpose.xlu0.b32.cont [7/16] 0.0, 128
        %1442 = vxpose.xlu0.b32.cont [8/16] 0.0, 128
        %1443 = vxpose.xlu0.b32.cont [9/16] 0.0, 128
        %1444 = vxpose.xlu0.b32.cont [10/16] 0.0, 128
        %1445 = vxpose.xlu0.b32.cont [11/16] 0.0, 128
        %1446 = vxpose.xlu0.b32.cont [12/16] 0.0, 128
        %1447 = vxpose.xlu0.b32.cont [13/16] 0.0, 128
        %1448 = vxpose.xlu0.b32.cont [14/16] 0.0, 128
        %1449 = vxpose.xlu0.b32.cont [15/16] 0.0, 128
        %1450 = vxpose.xlu0.b32.end [16/16] 0.0, 128
        %v1451 = vpop.trf.xlu0
        %v1452 = vpop.trf.xlu0
        %v1453 = vpop.trf.xlu0
        %v1454 = vpop.trf.xlu0
        %v1455 = vpop.trf.xlu0
        %v1456 = vpop.trf.xlu0
        %v1457 = vpop.trf.xlu0
        %v1458 = vpop.trf.xlu0
        %v1459 = vpop.trf.xlu0
        %v1460 = vpop.trf.xlu0
        %v1461 = vpop.trf.xlu0
        %v1462 = vpop.trf.xlu0
        %v1463 = vpop.trf.xlu0
        %v1464 = vpop.trf.xlu0
        %v1465 = vpop.trf.xlu0
        %v1466 = vpop.trf.xlu0
        %1467 = vst.msk [vmem:[%s458] sm:$0xff] %vm523, %v1451
        %s1468 = sand.u32 %s300, 1
        %s1469 = scalar_lea.sflag [#allocation3], %s1468
        %s1470 = sand.u32 %s300, 1
        %s1471 = smul.addr %s1470, 8
        %s1472 = scalar_lea.vmem [#allocation2], %s1471
        %s1473 = sand.u32 %s328, 1
        %s1474 = scalar_lea.sflag [#allocation5], %s1473
        %s1475 = sand.u32 %s328, 1
        %s1476 = smul.addr %s1475, 16
        %s1477 = scalar_lea.vmem [#allocation4], %s1476
        // Predicated region
        $region65: #{tpu_custom_call.1} parent=63 // pred_check
          %p1478 = pneg %p310
        $region66: #{tpu_custom_call.1} parent=63 // pred_check_branch
          %1480 = sbr.rel (%p1478) target = $region68
        $region67: #{tpu_custom_call.1} parent=63 // pred_region
          %s1482 = ssub.s32 128, 128
          %1483 = vsyncadd %s1469, %s1482
          %s1484 = sadd.s32 %s35, %s34
          %s1485 = smul.addr %s1484, 128
          %s1486 = scalar_lea.hbm %s11, %s1485
          %s1488 = sshll.u32 %s1472, 4
          %s1489 = int_to_ptr.vmem [resolvable:$true] %s1488
          %1491 = dma.vmem_to_hbm [thread:$0]  %s1489, 128, %s1486, %s1469
        $region68: #{tpu_custom_call.1} parent=63 // pred_fallthru
          _
        // Predicated region
        $region69: #{tpu_custom_call.1} parent=63 // pred_check
          %p1492 = pneg %p338
        $region70: #{tpu_custom_call.1} parent=63 // pred_check_branch
          %1494 = sbr.rel (%p1492) target = $region72
        $region71: #{tpu_custom_call.1} parent=63 // pred_region
          %s1496 = ssub.s32 256, 256
          %1497 = vsyncadd %s1474, %s1496
          %s1498 = smul.addr %s34, 4
          %s1499 = sadd.s32 %s35, %s1498
          %s1500 = smul.addr %s1499, 64
          %s1501 = scalar_lea.hbm %s12, %s1500
          %s1502 = sshll.u32 %s1477, 4
          %s1503 = int_to_ptr.vmem [resolvable:$true] %s1502
          %1508 = dma.vmem_to_hbm [thread:$0]  %s1503, 256, %s1501, %s1474, 64, 64, 4
        $region72: #{tpu_custom_call.1} parent=63 // pred_fallthru
          _
      $region64: #{tpu_custom_call.1} parent=5 // pred_fallthru
        _
      %p1509 = scmp.le.s32.totalorder 2, %s25
      // Predicated region
      $region73: #{tpu_custom_call.1} parent=5 // pred_check
        %p1510 = pneg %p1509
      $region74: #{tpu_custom_call.1} parent=5 // pred_check_branch
        %1512 = sbr.rel (%p1510) target = $region76
      $region75: #{tpu_custom_call.1} parent=5 // pred_region
        %s1513 = ssub.s32 %s25, 2
        // Predicated region
        $region77: #{tpu_custom_call.1} parent=75 // pred_check
          %p1514 = pneg %p316
        $region78: #{tpu_custom_call.1} parent=75 // pred_check_branch
          %1516 = sbr.rel (%p1514) target = $region80
        $region79: #{tpu_custom_call.1} parent=75 // pred_region
          %s1517 = sand.u32 %s301, 1
          %s1518 = scalar_lea.sflag [#allocation3], %s1517
          %s1519 = sand.u32 %s301, 1
          %s1520 = smul.addr %s1519, 8
          %s1521 = scalar_lea.vmem [#allocation2], %s1520
          %1522 = dma.done %s1518, 128
        $region80: #{tpu_custom_call.1} parent=75 // pred_fallthru
          _
        // Predicated region
        $region81: #{tpu_custom_call.1} parent=75 // pred_check
          %p1523 = pneg %p344
        $region82: #{tpu_custom_call.1} parent=75 // pred_check_branch
          %1525 = sbr.rel (%p1523) target = $region84
        $region83: #{tpu_custom_call.1} parent=75 // pred_region
          %s1526 = sand.u32 %s329, 1
          %s1527 = scalar_lea.sflag [#allocation5], %s1526
          %s1528 = sand.u32 %s329, 1
          %s1529 = smul.addr %s1528, 16
          %s1530 = scalar_lea.vmem [#allocation4], %s1529
          %1531 = dma.done %s1527, 256
        $region84: #{tpu_custom_call.1} parent=75 // pred_fallthru
          _
      $region76: #{tpu_custom_call.1} parent=5 // pred_fallthru
        _
    $region6: #{tpu_custom_call.1} parent=1 // loop_footer
      %s29 = sadd.s32 1, %s25
    $region7: #{tpu_custom_call.1} parent=1 // loop_footer_branch
      %24 = sbr.rel target = $region3
    $region8: #{tpu_custom_call.1} parent=1 // loop_exit
      _
    %1532 = vsyncpa [#allocation3], 1
    %s1533 = scalar_lea.sflag [#allocation3], 1
    %1534 = vsyncpa %s1533, 1
    %1535 = vsyncpa [#allocation5], 1
    %s1536 = scalar_lea.sflag [#allocation5], 1
    %1537 = vsyncpa %s1536, 1

</llo_original>
